<compile_context>
chip_gen: v7x
topology: tpu7x:2x2x1
jax: 0.10.0
libtpu: 0.0.40
codegen_flags: <defaults>
</compile_context>

<pallas_src>
import jax
import jax.numpy as jnp
from jax.experimental import pallas as pl
from jax.experimental.pallas import tpu as pltpu


def _round_up(x, m):
    return (x + m - 1) // m * m


def _make_rfm_kernel(R_in, R_out, Wp, G):
    # Tap offsets of a 3x3 conv on the flattened padded grid.  Output row o of
    # the tile reads staged actv row o + dy*Wp + (dx-1), dy,dx in {0,1,2}
    # (the staged actv block starts one image row above the output block).
    offs = [dy * Wp + dx - 1 for dy in range(3) for dx in range(3)]

    def kernel(q_ref, mask_ref, w1_ref, b1_ref, wgb_ref, bgb_ref, gb_ref,
               actv_ref):
        f32 = jnp.float32
        nh = actv_ref.shape[1]

        # Guard rows are only ever read for output rows that land on the
        # (cropped) left/right padding columns, so their values never reach
        # retained outputs; zero them once so step-0 reads are deterministic.
        @pl.when(pl.program_id(0) + pl.program_id(1) == 0)
        def _():
            actv_ref[0:G, :] = jnp.zeros((G, nh), f32)
            actv_ref[G + R_in:G + R_in + G, :] = jnp.zeros((G, nh), f32)

        # ---- conv1: one im2col matmul; bias + ring mask folded into ReLU ----
        acc = jnp.dot(q_ref[0], w1_ref[...], preferred_element_type=f32)
        actv_ref[G:G + R_in, :] = jnp.maximum(
            acc + b1_ref[...] + mask_ref[0], 0.0)

        # ---- conv2+conv3: gamma|beta packed along the output dim (N=2*Cx) ----
        g = jnp.dot(actv_ref[G + offs[0]:G + offs[0] + R_out, :], wgb_ref[0],
                    preferred_element_type=f32)
        for k in range(1, 9):
            o = offs[k]
            g = g + jnp.dot(actv_ref[G + o:G + o + R_out, :], wgb_ref[k],
                            preferred_element_type=f32)
        gb_ref[0] = (g + bgb_ref[...]).astype(gb_ref.dtype)

    return kernel


def rfm_forward(x, qmap, w1, b1, wg, bg, wb, bb, tile_h=None):
    """x: (B, x_nc, H, W), qmap: (B, prior_nc, H, W); conv weights in PyTorch
    OIHW layout, 1-D biases.  Returns (B, x_nc, H, W)."""
    B, Cx, H, W = x.shape
    _, Cin, _, _ = qmap.shape
    nh = w1.shape[0]
    assert w1.shape == (nh, Cin, 3, 3)
    assert wg.shape == (Cx, nh, 3, 3) and wb.shape == (Cx, nh, 3, 3)

    f32 = jnp.float32
    Hp, Wp = H + 2, W + 2
    K1 = _round_up(9 * Cin, 8)
    G = 8
    C2 = 2 * Cx

    def per_step_bytes(th):
        r_in, r_out = (th + 2) * Wp, th * Wp
        return 4 * (2 * r_in * K1 + 2 * r_in          # q + mask blocks (x2 buffers)
                    + 2 * r_out * C2                  # output block (x2 buffers)
                    + (r_in + 2 * G) * nh             # actv scratch
                    + r_in * nh + 2 * r_out * C2      # acc / g temporaries
                    + 2 * (K1 * nh + nh + 9 * nh * C2 + C2))   # resident params

    if tile_h is None:
        # largest divisor of H (<= 32 rows) that fits the VMEM budget; prefer
        # >= 2 tiles so megacore / the DMA pipeline has work even at batch 1.
        budget = 24 * 2**20
        divs = [d for d in range(1, H + 1) if H % d == 0]
        ok = [d for d in divs if d <= 32 and per_step_bytes(d) <= budget]
        multi = [d for d in ok if d < H]
        tile_h = max(multi or ok or [1])
    assert H % tile_h == 0
    T = H // tile_h
    R_in, R_out = (tile_h + 2) * Wp, tile_h * Wp

    # ---- conv1 im2col over the padded Hp x Wp grid (9 taps fused onto K) ----
    qn = jnp.transpose(qmap, (0, 2, 3, 1)).astype(f32)          # (B,H,W,Cin)
    qp2 = jnp.pad(qn, ((0, 0), (2, 2), (2, 2), (0, 0)))         # extra ring: ring taps stay in-bounds
    cols = [qp2[:, dy:dy + Hp, dx:dx + Wp, :]
            for dy in range(3) for dx in range(3)]
    qim = jnp.concatenate(cols, axis=-1)                        # (B,Hp,Wp,9*Cin)
    qim = jnp.pad(qim, ((0, 0), (0, 0), (0, 0), (0, K1 - 9 * Cin)))

    # row-tiles with a 1-image-row halo on each side (duplicated in HBM)
    ridx = jnp.arange(T)[:, None] * tile_h + jnp.arange(tile_h + 2)[None, :]
    q_t = qim[:, ridx].reshape(B * T, R_in, K1)

    # additive ring mask: 0 inside the original HxW image, -1e30 on the ring
    ry = (jnp.arange(Hp) >= 1) & (jnp.arange(Hp) <= H)
    rx = (jnp.arange(Wp) >= 1) & (jnp.arange(Wp) <= W)
    madd = jnp.where(ry[:, None] & rx[None, :], 0.0, -1e30).astype(f32)
    mask_t = madd[ridx].reshape(T, R_in, 1)

    # weights: OIHW -> matmul layouts; gamma/beta packed along the output dim
    w1k = jnp.transpose(w1, (2, 3, 1, 0)).reshape(9 * Cin, nh).astype(f32)
    w1k = jnp.pad(w1k, ((0, K1 - 9 * Cin), (0, 0)))             # (K1, nh)
    wgb = jnp.concatenate(
        [jnp.transpose(wg, (2, 3, 1, 0)).reshape(9, nh, Cx),
         jnp.transpose(wb, (2, 3, 1, 0)).reshape(9, nh, Cx)],
        axis=-1).astype(f32)                                    # (9, nh, 2*Cx)
    b1r = b1.reshape(1, nh).astype(f32)
    bgb = jnp.concatenate([bg, bb]).reshape(1, C2).astype(f32)

    vmem_limit = int(min(56 * 2**20,
                         max(32 * 2**20, 2 * per_step_bytes(tile_h))))
    kernel = _make_rfm_kernel(R_in, R_out, Wp, G)
    gb = pl.pallas_call(
        kernel,
        out_shape=jax.ShapeDtypeStruct((B * T, R_out, C2), x.dtype),
        grid=(B, T),
        in_specs=[
            pl.BlockSpec((1, R_in, K1), lambda b, t: (b * T + t, 0, 0)),  # q im2col tile
            pl.BlockSpec((1, R_in, 1), lambda b, t: (t, 0, 0)),           # additive ring mask
            pl.BlockSpec((K1, nh), lambda b, t: (0, 0)),                  # conv1 weights (resident)
            pl.BlockSpec((1, nh), lambda b, t: (0, 0)),                   # conv1 bias
            pl.BlockSpec((9, nh, C2), lambda b, t: (0, 0, 0)),            # gamma|beta weights
            pl.BlockSpec((1, C2), lambda b, t: (0, 0)),                   # gamma|beta biases
        ],
        out_specs=pl.BlockSpec((1, R_out, C2), lambda b, t: (b * T + t, 0, 0)),
        scratch_shapes=[pltpu.VMEM((R_in + 2 * G, nh), f32)],
        compiler_params=pltpu.CompilerParams(
            dimension_semantics=("parallel", "parallel"),
            vmem_limit_bytes=vmem_limit),
    )(q_t, mask_t, w1k, b1r, wgb, bgb)

    # XLA epilogue: crop the width padding, split gamma/beta and modulate x
    gb = gb.reshape(B, H, Wp, C2)[:, :, 1:W + 1, :]
    gamma, beta = gb[..., :Cx], gb[..., Cx:]
    xn = jnp.transpose(x, (0, 2, 3, 1))
    out = xn * (1.0 + gamma) + beta
    return jnp.transpose(out, (0, 3, 1, 2))


def rfm_ref(x, qmap, w1, b1, wg, bg, wb, bb):
    """Pure-JAX/XLA reference mirroring the PyTorch forward."""
    hp = jax.lax.Precision.HIGHEST
    dn = ('NCHW', 'OIHW', 'NCHW')

    def conv(inp, w):
        return jax.lax.conv_general_dilated(
            inp, w, window_strides=(1, 1), padding='SAME',
            dimension_numbers=dn, precision=hp)

    actv = jax.nn.relu(conv(qmap, w1) + b1.reshape(1, -1, 1, 1))
    gamma = conv(actv, wg) + bg.reshape(1, -1, 1, 1)
    beta = conv(actv, wb) + bb.reshape(1, -1, 1, 1)
    return x * (1.0 + gamma) + beta


if __name__ == "__main__":
    # RFM(x_nc=32, prior_nc=1, ks=3, nhidden=128) on a small 16x16 feature map.
    B, x_nc, prior_nc, nhidden, H, W = 2, 32, 1, 128, 16, 16

    key = jax.random.PRNGKey(0)
    ks = jax.random.split(key, 8)
    x = jax.random.normal(ks[0], (B, x_nc, H, W), dtype=jnp.float32)
    qmap = jax.random.normal(ks[1], (B, prior_nc, H, W), dtype=jnp.float32)
    w1 = 0.1 * jax.random.normal(ks[2], (nhidden, prior_nc, 3, 3), jnp.float32)
    b1 = 0.1 * jax.random.normal(ks[3], (nhidden,), jnp.float32)
    wg = 0.05 * jax.random.normal(ks[4], (x_nc, nhidden, 3, 3), jnp.float32)
    bg = 0.1 * jax.random.normal(ks[5], (x_nc,), jnp.float32)
    wb = 0.05 * jax.random.normal(ks[6], (x_nc, nhidden, 3, 3), jnp.float32)
    bb = 0.1 * jax.random.normal(ks[7], (x_nc,), jnp.float32)

    out = jax.block_until_ready(rfm_forward(x, qmap, w1, b1, wg, bg, wb, bb))
    ref = jax.block_until_ready(rfm_ref(x, qmap, w1, b1, wg, bg, wb, bb))

    assert out.shape == (B, x_nc, H, W), out.shape
    max_err = float(jnp.max(jnp.abs(out - ref)))
    assert jnp.allclose(out, ref, atol=5e-3, rtol=1e-3), max_err

    print("KERNEL_OK")
</pallas_src>

<mosaic_0001>
module attributes {stable_mosaic.version = 11 : i64} {
  func.func @kernel(%arg0: i32, %arg1: i32, %arg2: memref<1x180x16xf32, #tpu.memory_space<vmem>>, %arg3: memref<1x180x1xf32, #tpu.memory_space<vmem>>, %arg4: memref<16x128xf32, #tpu.memory_space<vmem>>, %arg5: memref<1x128xf32, #tpu.memory_space<vmem>>, %arg6: memref<9x128x64xf32, #tpu.memory_space<vmem>>, %arg7: memref<1x64xf32, #tpu.memory_space<vmem>>, %arg8: memref<1x144x64xf32, #tpu.memory_space<vmem>>, %arg9: memref<196x128xf32, #tpu.memory_space<vmem>>) attributes {dimension_semantics = [#tpu.dimension_semantics<parallel>, #tpu.dimension_semantics<parallel>], iteration_bounds = array<i64: 2, 2>, scalar_prefetch = 0 : i64, scratch_operands = 1 : i64, tpu.core_type = #tpu.core_type<tc>, window_params = [{transform_indices = @transform_0, window_bounds = array<i64: 1, 180, 16>}, {transform_indices = @transform_1, window_bounds = array<i64: 1, 180, 1>}, {pipeline_mode = #tpu.pipeline_mode<synchronous>, transform_indices = @transform_2, window_bounds = array<i64: 16, 128>}, {pipeline_mode = #tpu.pipeline_mode<synchronous>, transform_indices = @transform_3, window_bounds = array<i64: 1, 128>}, {pipeline_mode = #tpu.pipeline_mode<synchronous>, transform_indices = @transform_4, window_bounds = array<i64: 9, 128, 64>}, {pipeline_mode = #tpu.pipeline_mode<synchronous>, transform_indices = @transform_5, window_bounds = array<i64: 1, 64>}, {transform_indices = @transform_6, window_bounds = array<i64: 1, 144, 64>}]} {
    %0 = arith.addi %arg0, %arg1 : i32
    %c0_i32 = arith.constant 0 : i32
    %1 = arith.cmpi eq, %0, %c0_i32 : i32
    %2 = arith.extui %1 : i1 to i32
    %c0_i32_0 = arith.constant 0 : i32
    %3 = arith.cmpi ne, %2, %c0_i32_0 : i32
    scf.if %3 {
      %cst_57 = arith.constant 0.000000e+00 : f32
      %68 = vector.broadcast %cst_57 : f32 to vector<8x128xf32>
      %c0_58 = arith.constant 0 : index
      %c0_59 = arith.constant 0 : index
      %69 = vector.load %arg9[%c0_58, %c0_59] : memref<196x128xf32, #tpu.memory_space<vmem>>, vector<8x128xf32>
      tpu.vector_store %arg9[%c0_58, %c0_59], %68 {strides = array<i32>} : memref<196x128xf32, #tpu.memory_space<vmem>>, vector<8x128xf32>,
      %cst_60 = arith.constant 0.000000e+00 : f32
      %70 = vector.broadcast %cst_60 : f32 to vector<8x128xf32>
      %c188 = arith.constant 188 : index
      %c0_61 = arith.constant 0 : index
      %71 = vector.load %arg9[%c188, %c0_61] : memref<196x128xf32, #tpu.memory_space<vmem>>, vector<8x128xf32>
      tpu.vector_store %arg9[%c188, %c0_61], %70 {strides = array<i32>} : memref<196x128xf32, #tpu.memory_space<vmem>>, vector<8x128xf32>,
    } else {
    }
    %c0 = arith.constant 0 : index
    %c0_1 = arith.constant 0 : index
    %c0_2 = arith.constant 0 : index
    %4 = vector.load %arg2[%c0, %c0_1, %c0_2] : memref<1x180x16xf32, #tpu.memory_space<vmem>>, vector<1x180x16xf32>
    %5 = vector.shape_cast %4 : vector<1x180x16xf32> to vector<180x16xf32>
    %c0_3 = arith.constant 0 : index
    %c0_4 = arith.constant 0 : index
    %6 = vector.load %arg4[%c0_3, %c0_4] : memref<16x128xf32, #tpu.memory_space<vmem>>, vector<16x128xf32>
    %cst = arith.constant dense<0.000000e+00> : vector<180x128xf32>
    %7 = tpu.matmul %5, %6, %cst {dimension_numbers = #tpu.dot_dimension_numbers<[1], [0], [0], [1], [0, 0, 1, 1], [], []>} : vector<180x16xf32>, vector<16x128xf32>, vector<180x128xf32> -> vector<180x128xf32>
    %c0_5 = arith.constant 0 : index
    %c0_6 = arith.constant 0 : index
    %8 = vector.load %arg5[%c0_5, %c0_6] : memref<1x128xf32, #tpu.memory_space<vmem>>, vector<1x128xf32>
    %9 = vector.broadcast %8 : vector<1x128xf32> to vector<180x128xf32>
    %10 = arith.addf %7, %9 : vector<180x128xf32>
    %c0_7 = arith.constant 0 : index
    %c0_8 = arith.constant 0 : index
    %c0_9 = arith.constant 0 : index
    %11 = vector.load %arg3[%c0_7, %c0_8, %c0_9] : memref<1x180x1xf32, #tpu.memory_space<vmem>>, vector<1x180x1xf32>
    %12 = vector.shape_cast %11 : vector<1x180x1xf32> to vector<180x1xf32>
    %13 = vector.broadcast %12 : vector<180x1xf32> to vector<180x128xf32>
    %14 = arith.addf %10, %13 : vector<180x128xf32>
    %cst_10 = arith.constant 0.000000e+00 : f32
    %15 = vector.broadcast %cst_10 : f32 to vector<180x128xf32>
    %16 = arith.maximumf %14, %15 : vector<180x128xf32>
    %c8 = arith.constant 8 : index
    %c0_11 = arith.constant 0 : index
    %17 = vector.load %arg9[%c8, %c0_11] : memref<196x128xf32, #tpu.memory_space<vmem>>, vector<180x128xf32>
    tpu.vector_store %arg9[%c8, %c0_11], %16 {strides = array<i32>} : memref<196x128xf32, #tpu.memory_space<vmem>>, vector<180x128xf32>,
    %c7 = arith.constant 7 : index
    %c0_12 = arith.constant 0 : index
    %18 = vector.load %arg9[%c7, %c0_12] : memref<196x128xf32, #tpu.memory_space<vmem>>, vector<144x128xf32>
    %c0_13 = arith.constant 0 : index
    %c0_14 = arith.constant 0 : index
    %c0_15 = arith.constant 0 : index
    %19 = vector.load %arg6[%c0_13, %c0_14, %c0_15] : memref<9x128x64xf32, #tpu.memory_space<vmem>>, vector<1x128x64xf32>
    %20 = vector.shape_cast %19 : vector<1x128x64xf32> to vector<128x64xf32>
    %cst_16 = arith.constant dense<0.000000e+00> : vector<144x64xf32>
    %21 = tpu.matmul %18, %20, %cst_16 {dimension_numbers = #tpu.dot_dimension_numbers<[1], [0], [0], [1], [0, 0, 1, 1], [], []>} : vector<144x128xf32>, vector<128x64xf32>, vector<144x64xf32> -> vector<144x64xf32>
    %c8_17 = arith.constant 8 : index
    %c0_18 = arith.constant 0 : index
    %22 = vector.load %arg9[%c8_17, %c0_18] : memref<196x128xf32, #tpu.memory_space<vmem>>, vector<144x128xf32>
    %c1 = arith.constant 1 : index
    %c0_19 = arith.constant 0 : index
    %c0_20 = arith.constant 0 : index
    %23 = vector.load %arg6[%c1, %c0_19, %c0_20] : memref<9x128x64xf32, #tpu.memory_space<vmem>>, vector<1x128x64xf32>
    %24 = vector.shape_cast %23 : vector<1x128x64xf32> to vector<128x64xf32>
    %cst_21 = arith.constant dense<0.000000e+00> : vector<144x64xf32>
    %25 = tpu.matmul %22, %24, %cst_21 {dimension_numbers = #tpu.dot_dimension_numbers<[1], [0], [0], [1], [0, 0, 1, 1], [], []>} : vector<144x128xf32>, vector<128x64xf32>, vector<144x64xf32> -> vector<144x64xf32>
    %26 = arith.addf %21, %25 : vector<144x64xf32>
    %c9 = arith.constant 9 : index
    %c0_22 = arith.constant 0 : index
    %27 = vector.load %arg9[%c9, %c0_22] : memref<196x128xf32, #tpu.memory_space<vmem>>, vector<144x128xf32>
    %c2 = arith.constant 2 : index
    %c0_23 = arith.constant 0 : index
    %c0_24 = arith.constant 0 : index
    %28 = vector.load %arg6[%c2, %c0_23, %c0_24] : memref<9x128x64xf32, #tpu.memory_space<vmem>>, vector<1x128x64xf32>
    %29 = vector.shape_cast %28 : vector<1x128x64xf32> to vector<128x64xf32>
    %cst_25 = arith.constant dense<0.000000e+00> : vector<144x64xf32>
    %30 = tpu.matmul %27, %29, %cst_25 {dimension_numbers = #tpu.dot_dimension_numbers<[1], [0], [0], [1], [0, 0, 1, 1], [], []>} : vector<144x128xf32>, vector<128x64xf32>, vector<144x64xf32> -> vector<144x64xf32>
    %31 = arith.addf %26, %30 : vector<144x64xf32>
    %c25 = arith.constant 25 : index
    %c0_26 = arith.constant 0 : index
    %32 = vector.load %arg9[%c25, %c0_26] : memref<196x128xf32, #tpu.memory_space<vmem>>, vector<144x128xf32>
    %c3 = arith.constant 3 : index
    %c0_27 = arith.constant 0 : index
    %c0_28 = arith.constant 0 : index
    %33 = vector.load %arg6[%c3, %c0_27, %c0_28] : memref<9x128x64xf32, #tpu.memory_space<vmem>>, vector<1x128x64xf32>
    %34 = vector.shape_cast %33 : vector<1x128x64xf32> to vector<128x64xf32>
    %cst_29 = arith.constant dense<0.000000e+00> : vector<144x64xf32>
    %35 = tpu.matmul %32, %34, %cst_29 {dimension_numbers = #tpu.dot_dimension_numbers<[1], [0], [0], [1], [0, 0, 1, 1], [], []>} : vector<144x128xf32>, vector<128x64xf32>, vector<144x64xf32> -> vector<144x64xf32>
    %36 = arith.addf %31, %35 : vector<144x64xf32>
    %c26 = arith.constant 26 : index
    %c0_30 = arith.constant 0 : index
    %37 = vector.load %arg9[%c26, %c0_30] : memref<196x128xf32, #tpu.memory_space<vmem>>, vector<144x128xf32>
    %c4 = arith.constant 4 : index
    %c0_31 = arith.constant 0 : index
    %c0_32 = arith.constant 0 : index
    %38 = vector.load %arg6[%c4, %c0_31, %c0_32] : memref<9x128x64xf32, #tpu.memory_space<vmem>>, vector<1x128x64xf32>
    %39 = vector.shape_cast %38 : vector<1x128x64xf32> to vector<128x64xf32>
    %cst_33 = arith.constant dense<0.000000e+00> : vector<144x64xf32>
    %40 = tpu.matmul %37, %39, %cst_33 {dimension_numbers = #tpu.dot_dimension_numbers<[1], [0], [0], [1], [0, 0, 1, 1], [], []>} : vector<144x128xf32>, vector<128x64xf32>, vector<144x64xf32> -> vector<144x64xf32>
    %41 = arith.addf %36, %40 : vector<144x64xf32>
    %c27 = arith.constant 27 : index
    %c0_34 = arith.constant 0 : index
    %42 = vector.load %arg9[%c27, %c0_34] : memref<196x128xf32, #tpu.memory_space<vmem>>, vector<144x128xf32>
    %c5 = arith.constant 5 : index
    %c0_35 = arith.constant 0 : index
    %c0_36 = arith.constant 0 : index
    %43 = vector.load %arg6[%c5, %c0_35, %c0_36] : memref<9x128x64xf32, #tpu.memory_space<vmem>>, vector<1x128x64xf32>
    %44 = vector.shape_cast %43 : vector<1x128x64xf32> to vector<128x64xf32>
    %cst_37 = arith.constant dense<0.000000e+00> : vector<144x64xf32>
    %45 = tpu.matmul %42, %44, %cst_37 {dimension_numbers = #tpu.dot_dimension_numbers<[1], [0], [0], [1], [0, 0, 1, 1], [], []>} : vector<144x128xf32>, vector<128x64xf32>, vector<144x64xf32> -> vector<144x64xf32>
    %46 = arith.addf %41, %45 : vector<144x64xf32>
    %c43 = arith.constant 43 : index
    %c0_38 = arith.constant 0 : index
    %47 = vector.load %arg9[%c43, %c0_38] : memref<196x128xf32, #tpu.memory_space<vmem>>, vector<144x128xf32>
    %c6 = arith.constant 6 : index
    %c0_39 = arith.constant 0 : index
    %c0_40 = arith.constant 0 : index
    %48 = vector.load %arg6[%c6, %c0_39, %c0_40] : memref<9x128x64xf32, #tpu.memory_space<vmem>>, vector<1x128x64xf32>
    %49 = vector.shape_cast %48 : vector<1x128x64xf32> to vector<128x64xf32>
    %cst_41 = arith.constant dense<0.000000e+00> : vector<144x64xf32>
    %50 = tpu.matmul %47, %49, %cst_41 {dimension_numbers = #tpu.dot_dimension_numbers<[1], [0], [0], [1], [0, 0, 1, 1], [], []>} : vector<144x128xf32>, vector<128x64xf32>, vector<144x64xf32> -> vector<144x64xf32>
    %51 = arith.addf %46, %50 : vector<144x64xf32>
    %c44 = arith.constant 44 : index
    %c0_42 = arith.constant 0 : index
    %52 = vector.load %arg9[%c44, %c0_42] : memref<196x128xf32, #tpu.memory_space<vmem>>, vector<144x128xf32>
    %c7_43 = arith.constant 7 : index
    %c0_44 = arith.constant 0 : index
    %c0_45 = arith.constant 0 : index
    %53 = vector.load %arg6[%c7_43, %c0_44, %c0_45] : memref<9x128x64xf32, #tpu.memory_space<vmem>>, vector<1x128x64xf32>
    %54 = vector.shape_cast %53 : vector<1x128x64xf32> to vector<128x64xf32>
    %cst_46 = arith.constant dense<0.000000e+00> : vector<144x64xf32>
    %55 = tpu.matmul %52, %54, %cst_46 {dimension_numbers = #tpu.dot_dimension_numbers<[1], [0], [0], [1], [0, 0, 1, 1], [], []>} : vector<144x128xf32>, vector<128x64xf32>, vector<144x64xf32> -> vector<144x64xf32>
    %56 = arith.addf %51, %55 : vector<144x64xf32>
    %c45 = arith.constant 45 : index
    %c0_47 = arith.constant 0 : index
    %57 = vector.load %arg9[%c45, %c0_47] : memref<196x128xf32, #tpu.memory_space<vmem>>, vector<144x128xf32>
    %c8_48 = arith.constant 8 : index
    %c0_49 = arith.constant 0 : index
    %c0_50 = arith.constant 0 : index
    %58 = vector.load %arg6[%c8_48, %c0_49, %c0_50] : memref<9x128x64xf32, #tpu.memory_space<vmem>>, vector<1x128x64xf32>
    %59 = vector.shape_cast %58 : vector<1x128x64xf32> to vector<128x64xf32>
    %cst_51 = arith.constant dense<0.000000e+00> : vector<144x64xf32>
    %60 = tpu.matmul %57, %59, %cst_51 {dimension_numbers = #tpu.dot_dimension_numbers<[1], [0], [0], [1], [0, 0, 1, 1], [], []>} : vector<144x128xf32>, vector<128x64xf32>, vector<144x64xf32> -> vector<144x64xf32>
    %61 = arith.addf %56, %60 : vector<144x64xf32>
    %c0_52 = arith.constant 0 : index
    %c0_53 = arith.constant 0 : index
    %62 = vector.load %arg7[%c0_52, %c0_53] : memref<1x64xf32, #tpu.memory_space<vmem>>, vector<1x64xf32>
    %63 = vector.broadcast %62 : vector<1x64xf32> to vector<144x64xf32>
    %64 = arith.addf %61, %63 : vector<144x64xf32>
    %c0_54 = arith.constant 0 : index
    %c0_55 = arith.constant 0 : index
    %c0_56 = arith.constant 0 : index
    %65 = vector.load %arg8[%c0_54, %c0_55, %c0_56] : memref<1x144x64xf32, #tpu.memory_space<vmem>>, vector<1x144x64xf32>
    %66 = vector.shape_cast %65 : vector<1x144x64xf32> to vector<144x64xf32>
    %67 = vector.shape_cast %64 : vector<144x64xf32> to vector<1x144x64xf32>
    tpu.vector_store %arg8[%c0_54, %c0_55, %c0_56], %67 {strides = array<i32>} : memref<1x144x64xf32, #tpu.memory_space<vmem>>, vector<1x144x64xf32>,
    return
  }
  func.func @transform_0(%arg0: i32, %arg1: i32) -> (i32, i32, i32) {
    %c2_i32 = arith.constant 2 : i32
    %0 = arith.muli %arg0, %c2_i32 : i32
    %1 = arith.addi %0, %arg1 : i32
    %c0_i32 = arith.constant 0 : i32
    %c0_i32_0 = arith.constant 0 : i32
    %c0_i32_1 = arith.constant 0 : i32
    return %1, %c0_i32, %c0_i32_0 : i32, i32, i32
  }
  func.func @transform_1(%arg0: i32, %arg1: i32) -> (i32, i32, i32) {
    %c0_i32 = arith.constant 0 : i32
    %c0_i32_0 = arith.constant 0 : i32
    %c0_i32_1 = arith.constant 0 : i32
    return %arg1, %c0_i32, %c0_i32_0 : i32, i32, i32
  }
  func.func @transform_2(%arg0: i32, %arg1: i32) -> (i32, i32) {
    %c0_i32 = arith.constant 0 : i32
    %c0_i32_0 = arith.constant 0 : i32
    %c0_i32_1 = arith.constant 0 : i32
    return %c0_i32, %c0_i32_0 : i32, i32
  }
  func.func @transform_3(%arg0: i32, %arg1: i32) -> (i32, i32) {
    %c0_i32 = arith.constant 0 : i32
    %c0_i32_0 = arith.constant 0 : i32
    %c0_i32_1 = arith.constant 0 : i32
    return %c0_i32, %c0_i32_0 : i32, i32
  }
  func.func @transform_4(%arg0: i32, %arg1: i32) -> (i32, i32, i32) {
    %c0_i32 = arith.constant 0 : i32
    %c0_i32_0 = arith.constant 0 : i32
    %c0_i32_1 = arith.constant 0 : i32
    %c0_i32_2 = arith.constant 0 : i32
    return %c0_i32, %c0_i32_0, %c0_i32_1 : i32, i32, i32
  }
  func.func @transform_5(%arg0: i32, %arg1: i32) -> (i32, i32) {
    %c0_i32 = arith.constant 0 : i32
    %c0_i32_0 = arith.constant 0 : i32
    %c0_i32_1 = arith.constant 0 : i32
    return %c0_i32, %c0_i32_0 : i32, i32
  }
  func.func @transform_6(%arg0: i32, %arg1: i32) -> (i32, i32, i32) {
    %c2_i32 = arith.constant 2 : i32
    %0 = arith.muli %arg0, %c2_i32 : i32
    %1 = arith.addi %0, %arg1 : i32
    %c0_i32 = arith.constant 0 : i32
    %c0_i32_0 = arith.constant 0 : i32
    %c0_i32_1 = arith.constant 0 : i32
    return %1, %c0_i32, %c0_i32_0 : i32, i32, i32
  }
}

</mosaic_0001>

<llo_original>
// kernel: tpu_custom_call.1
$region0: #{tpu_custom_call.1}
  #allocation0 [shape = 'u32[]', space=smem, size = 0x4, offset = 0x4, fixed_abs, tag = 'smem constant byte address 0x4 - core index']
  #allocation1 [shape = 'u32[144,128]{1,0:T(1,128)}', space=vmem, size = 0x12000, scoped, tag = 'internal scratch']
  #allocation2 [shape = 'f32[196,128]{1,0:T(8,128)}', space=vmem, size = 0x19000, scoped, tag = 'scratch operand']
  %s0 = inlined_call_operand.vmem [shape: f32[4,180,16], index: 0, kind: input, shape index: {}]
  %s1 = inlined_call_operand.vmem [shape: f32[2,180,1], index: 1, kind: input, shape index: {}]
  %s2 = inlined_call_operand.vmem [shape: f32[16,128], index: 2, kind: input, shape index: {}]
  %s3 = inlined_call_operand.vmem [shape: f32[1,128], index: 3, kind: input, shape index: {}]
  %s4 = inlined_call_operand.vmem [shape: f32[9,128,64], index: 4, kind: input, shape index: {}]
  %s5 = inlined_call_operand.vmem [shape: f32[1,64], index: 5, kind: input, shape index: {}]
  %s6 = inlined_call_operand.vmem [shape: f32[4,144,64], index: 6, kind: output, shape index: {}]
  %s7 = sld [smem:[#allocation0]]
  $region61: #{tpu_custom_call.1} parent=0
    _
  %s9 = ssub.s32 1, %s7
  %s10 = scalar_select 0, %s9, %s7
  loop: start=0, step=1, limit=6
  $region2: #{tpu_custom_call.1} parent=0 // loop_pre_header
    _
  $region3: #{tpu_custom_call.1} parent=0 // loop_header
    %s12 = sphi 0, %s16
    %p13 = scmp.ge.s32.totalorder %s12, 6
    %s19 = sphi 0, %s31
    %s20 = sphi 0, %s27
    %s21 = sphi 0, %s19
    %s22 = sphi 0, %s20
    %s23 = sphi 0, %s21
    %s24 = sphi 0, %s22
    %s38 = sphi 0, %s40
    %s41 = sphi 0, %s38
    %s42 = sphi 0, %s41
    %s58 = sphi 0, %s42
    %s64 = sphi 0, %s66
    %s67 = sphi 0, %s64
    %s68 = sphi 0, %s67
    %s84 = sphi 0, %s68
    %s88 = sphi 0, %s88
    %s90 = sphi 0, %s88
    %s91 = sphi 0, %s90
    %s105 = sphi 0, %s91
    %s109 = sphi 0, %s109
    %s111 = sphi 0, %s109
    %s112 = sphi 0, %s111
    %s126 = sphi 0, %s112
    %s130 = sphi 0, %s130
    %s132 = sphi 0, %s130
    %s133 = sphi 0, %s132
    %s147 = sphi 0, %s133
    %s151 = sphi 0, %s151
    %s153 = sphi 0, %s151
    %s154 = sphi 0, %s153
    %s168 = sphi 0, %s154
    %s178 = sphi 0, %s180
    %s181 = sphi 0, %s178
    %s182 = sphi 0, %s181
    %s198 = sphi 0, %s182
  $region4: #{tpu_custom_call.1} parent=0 // loop_header_branch
    %15 = sbr.rel (%p13) target = $region8
  $region5: #{tpu_custom_call.1} parent=0 // loop_body
    %s17 = ssub.s32 %s12, 1
    %s18 = ssub.s32 %s12, 2
    %s25 = sadd.s32 1, %s20
    %p26 = scmp.ge.s32.totalorder %s25, 2
    %s27 = scalar_select %p26, 0, %s25
    %s28 = sadd.s32 1, %s19
    %s29 = scalar_select %p26, %s28, %s19
    %p30 = scmp.ge.s32.totalorder %s29, 2
    %s31 = scalar_select %p30, 0, %s29
    %s32 = smul.u32 %s19, 2
    %s33 = sadd.s32 %s32, %s20
    %s34 = smul.u32 %s31, 2
    %s35 = sadd.s32 %s34, %s27
    %s36 = ssub.s32 %s33, %s35
    %p37 = scmp.eq.s32.totalorder %s36, 0
    %s39 = sadd.s32 %s38, 1
    %s40 = scalar_select %p37, %s38, %s39
    %p43 = pneg %p37
    %p44 = scmp.eq.s32.totalorder %s12, 3
    %p45 = por %p43, %p44
    %p46 = scmp.ne.s32.totalorder %s38, %s41
    %p47 = scmp.eq.s32.totalorder %s12, 0
    %p48 = por %p46, %p47
    %p49 = scmp.ne.s32.totalorder %s38, %s41
    %p50 = scmp.eq.s32.totalorder %s17, 3
    %p51 = por %p49, %p50
    %p52 = scmp.ne.s32.totalorder %s41, %s42
    %p53 = scmp.eq.s32.totalorder %s17, 0
    %p54 = por %p52, %p53
    %p55 = scmp.ne.s32.totalorder %s41, %s42
    %p56 = scmp.eq.s32.totalorder %s18, 3
    %p57 = por %p55, %p56
    %p59 = scmp.ne.s32.totalorder %s42, %s58
    %p60 = scmp.eq.s32.totalorder %s18, 0
    %p61 = por %p59, %p60
    %s62 = ssub.s32 %s20, %s27
    %p63 = scmp.eq.s32.totalorder %s62, 0
    %s65 = sadd.s32 %s64, 1
    %s66 = scalar_select %p63, %s64, %s65
    %p69 = pneg %p63
    %p70 = scmp.eq.s32.totalorder %s12, 3
    %p71 = por %p69, %p70
    %p72 = scmp.ne.s32.totalorder %s64, %s67
    %p73 = scmp.eq.s32.totalorder %s12, 0
    %p74 = por %p72, %p73
    %p75 = scmp.ne.s32.totalorder %s64, %s67
    %p76 = scmp.eq.s32.totalorder %s17, 3
    %p77 = por %p75, %p76
    %p78 = scmp.ne.s32.totalorder %s67, %s68
    %p79 = scmp.eq.s32.totalorder %s17, 0
    %p80 = por %p78, %p79
    %p81 = scmp.ne.s32.totalorder %s67, %s68
    %p82 = scmp.eq.s32.totalorder %s18, 3
    %p83 = por %p81, %p82
    %p85 = scmp.ne.s32.totalorder %s68, %s84
    %p86 = scmp.eq.s32.totalorder %s18, 0
    %p87 = por %p85, %p86
    %s89 = sadd.s32 %s88, 1
    %p92 = scmp.eq.s32.totalorder %s12, 3
    %p93 = scmp.ne.s32.totalorder %s88, %s90
    %p94 = scmp.eq.s32.totalorder %s12, 0
    %p95 = por %p93, %p94
    %p96 = scmp.ne.s32.totalorder %s88, %s90
    %p97 = scmp.eq.s32.totalorder %s17, 3
    %p98 = por %p96, %p97
    %p99 = scmp.ne.s32.totalorder %s90, %s91
    %p100 = scmp.eq.s32.totalorder %s17, 0
    %p101 = por %p99, %p100
    %p102 = scmp.ne.s32.totalorder %s90, %s91
    %p103 = scmp.eq.s32.totalorder %s18, 3
    %p104 = por %p102, %p103
    %p106 = scmp.ne.s32.totalorder %s91, %s105
    %p107 = scmp.eq.s32.totalorder %s18, 0
    %p108 = por %p106, %p107
    %s110 = sadd.s32 %s109, 1
    %p113 = scmp.eq.s32.totalorder %s12, 3
    %p114 = scmp.ne.s32.totalorder %s109, %s111
    %p115 = scmp.eq.s32.totalorder %s12, 0
    %p116 = por %p114, %p115
    %p117 = scmp.ne.s32.totalorder %s109, %s111
    %p118 = scmp.eq.s32.totalorder %s17, 3
    %p119 = por %p117, %p118
    %p120 = scmp.ne.s32.totalorder %s111, %s112
    %p121 = scmp.eq.s32.totalorder %s17, 0
    %p122 = por %p120, %p121
    %p123 = scmp.ne.s32.totalorder %s111, %s112
    %p124 = scmp.eq.s32.totalorder %s18, 3
    %p125 = por %p123, %p124
    %p127 = scmp.ne.s32.totalorder %s112, %s126
    %p128 = scmp.eq.s32.totalorder %s18, 0
    %p129 = por %p127, %p128
    %s131 = sadd.s32 %s130, 1
    %p134 = scmp.eq.s32.totalorder %s12, 3
    %p135 = scmp.ne.s32.totalorder %s130, %s132
    %p136 = scmp.eq.s32.totalorder %s12, 0
    %p137 = por %p135, %p136
    %p138 = scmp.ne.s32.totalorder %s130, %s132
    %p139 = scmp.eq.s32.totalorder %s17, 3
    %p140 = por %p138, %p139
    %p141 = scmp.ne.s32.totalorder %s132, %s133
    %p142 = scmp.eq.s32.totalorder %s17, 0
    %p143 = por %p141, %p142
    %p144 = scmp.ne.s32.totalorder %s132, %s133
    %p145 = scmp.eq.s32.totalorder %s18, 3
    %p146 = por %p144, %p145
    %p148 = scmp.ne.s32.totalorder %s133, %s147
    %p149 = scmp.eq.s32.totalorder %s18, 0
    %p150 = por %p148, %p149
    %s152 = sadd.s32 %s151, 1
    %p155 = scmp.eq.s32.totalorder %s12, 3
    %p156 = scmp.ne.s32.totalorder %s151, %s153
    %p157 = scmp.eq.s32.totalorder %s12, 0
    %p158 = por %p156, %p157
    %p159 = scmp.ne.s32.totalorder %s151, %s153
    %p160 = scmp.eq.s32.totalorder %s17, 3
    %p161 = por %p159, %p160
    %p162 = scmp.ne.s32.totalorder %s153, %s154
    %p163 = scmp.eq.s32.totalorder %s17, 0
    %p164 = por %p162, %p163
    %p165 = scmp.ne.s32.totalorder %s153, %s154
    %p166 = scmp.eq.s32.totalorder %s18, 3
    %p167 = por %p165, %p166
    %p169 = scmp.ne.s32.totalorder %s154, %s168
    %p170 = scmp.eq.s32.totalorder %s18, 0
    %p171 = por %p169, %p170
    %s172 = smul.u32 %s19, 2
    %s173 = sadd.s32 %s172, %s20
    %s174 = smul.u32 %s31, 2
    %s175 = sadd.s32 %s174, %s27
    %s176 = ssub.s32 %s173, %s175
    %p177 = scmp.eq.s32.totalorder %s176, 0
    %s179 = sadd.s32 %s178, 1
    %s180 = scalar_select %p177, %s178, %s179
    %p183 = pneg %p177
    %p184 = scmp.eq.s32.totalorder %s12, 3
    %p185 = por %p183, %p184
    %p186 = scmp.ne.s32.totalorder %s178, %s181
    %p187 = scmp.eq.s32.totalorder %s12, 0
    %p188 = por %p186, %p187
    %p189 = scmp.ne.s32.totalorder %s178, %s181
    %p190 = scmp.eq.s32.totalorder %s17, 3
    %p191 = por %p189, %p190
    %p192 = scmp.ne.s32.totalorder %s181, %s182
    %p193 = scmp.eq.s32.totalorder %s17, 0
    %p194 = por %p192, %p193
    %p195 = scmp.ne.s32.totalorder %s181, %s182
    %p196 = scmp.eq.s32.totalorder %s18, 3
    %p197 = por %p195, %p196
    %p199 = scmp.ne.s32.totalorder %s182, %s198
    %p200 = scmp.eq.s32.totalorder %s18, 0
    %p201 = por %p199, %p200
    %p202 = scmp.le.s32.totalorder 1, %s12
    %p203 = scmp.lt.s32.totalorder %s12, 5
    %p204 = pnand %p202, %p203
    %p205 = pneg %p204
    // Predicated region
    $region9: #{tpu_custom_call.1} parent=5 // pred_check
      _
    $region10: #{tpu_custom_call.1} parent=5 // pred_check_branch
      %207 = sbr.rel (%p204) target = $region12
    $region11: #{tpu_custom_call.1} parent=5 // pred_region
      %s208 = ssub.s32 %s12, 1
      // Predicated region
      $region13: #{tpu_custom_call.1} parent=11 // pred_check
        %p209 = pneg %p101
      $region14: #{tpu_custom_call.1} parent=11 // pred_check_branch
        %211 = sbr.rel (%p209) target = $region16
      $region15: #{tpu_custom_call.1} parent=11 // pred_region
        _
      $region16: #{tpu_custom_call.1} parent=11 // pred_fallthru
        _
      // Predicated region
      $region17: #{tpu_custom_call.1} parent=11 // pred_check
        %p212 = pneg %p122
      $region18: #{tpu_custom_call.1} parent=11 // pred_check_branch
        %214 = sbr.rel (%p212) target = $region20
      $region19: #{tpu_custom_call.1} parent=11 // pred_region
        _
      $region20: #{tpu_custom_call.1} parent=11 // pred_fallthru
        _
      // Predicated region
      $region21: #{tpu_custom_call.1} parent=11 // pred_check
        %p215 = pneg %p143
      $region22: #{tpu_custom_call.1} parent=11 // pred_check_branch
        %217 = sbr.rel (%p215) target = $region24
      $region23: #{tpu_custom_call.1} parent=11 // pred_region
        _
      $region24: #{tpu_custom_call.1} parent=11 // pred_fallthru
        _
      // Predicated region
      $region25: #{tpu_custom_call.1} parent=11 // pred_check
        %p218 = pneg %p164
      $region26: #{tpu_custom_call.1} parent=11 // pred_check_branch
        %220 = sbr.rel (%p218) target = $region28
      $region27: #{tpu_custom_call.1} parent=11 // pred_region
        _
      $region28: #{tpu_custom_call.1} parent=11 // pred_fallthru
        _
    $region12: #{tpu_custom_call.1} parent=5 // pred_fallthru
      _
    %p221 = scmp.lt.s32.totalorder %s12, 4
    // Predicated region
    $region29: #{tpu_custom_call.1} parent=5 // pred_check
      %p222 = pneg %p221
    $region30: #{tpu_custom_call.1} parent=5 // pred_check_branch
      %224 = sbr.rel (%p222) target = $region32
    $region31: #{tpu_custom_call.1} parent=5 // pred_region
      // Predicated region
      $region33: #{tpu_custom_call.1} parent=31 // pred_check
        %p225 = pneg %p48
      $region34: #{tpu_custom_call.1} parent=31 // pred_check_branch
        %227 = sbr.rel (%p225) target = $region36
      $region35: #{tpu_custom_call.1} parent=31 // pred_region
        %s228 = smul.u32 %s19, 2
        %s229 = sadd.s32 %s228, %s20
        %p230 = scmp.lt.s32.totalorder %s229, 3
        %s231 = scalar_select %p230, %s229, 3
        %s232 = smul.addr %s231, 23
        %s233 = smul.addr %s232, 8
        %s234 = scalar_lea.vmem %s0, %s233
        %s235 = smul.u32 %s19, 2
        %s236 = sadd.s32 %s235, %s20
      $region36: #{tpu_custom_call.1} parent=31 // pred_fallthru
        _
      // Predicated region
      $region37: #{tpu_custom_call.1} parent=31 // pred_check
        %p237 = pneg %p74
      $region38: #{tpu_custom_call.1} parent=31 // pred_check_branch
        %239 = sbr.rel (%p237) target = $region40
      $region39: #{tpu_custom_call.1} parent=31 // pred_region
        %p240 = scmp.lt.s32.totalorder %s20, 1
        %s241 = scalar_select %p240, %s20, 1
        %s242 = smul.addr %s241, 23
        %s243 = smul.addr %s242, 8
        %s244 = scalar_lea.vmem %s1, %s243
      $region40: #{tpu_custom_call.1} parent=31 // pred_fallthru
        _
    $region32: #{tpu_custom_call.1} parent=5 // pred_fallthru
      _
    %p245 = scmp.le.s32.totalorder 1, %s12
    %p246 = scmp.lt.s32.totalorder %s12, 5
    %p247 = pnand %p245, %p246
    %p248 = pneg %p247
    // Predicated region
    $region41: #{tpu_custom_call.1} parent=5 // pred_check
      _
    $region42: #{tpu_custom_call.1} parent=5 // pred_check_branch
      %250 = sbr.rel (%p247) target = $region44
    $region43: #{tpu_custom_call.1} parent=5 // pred_region
      %s251 = ssub.s32 %s12, 1
      %s252 = smul.u32 %s21, 2
      %s253 = sadd.s32 %s252, %s22
      %p254 = scmp.lt.s32.totalorder %s253, 3
      %s255 = scalar_select %p254, %s253, 3
      %s256 = smul.addr %s255, 23
      %s257 = smul.addr %s256, 8
      %s258 = scalar_lea.vmem %s0, %s257
      %p259 = pneg %p54
      %p260 = pneg %p51
      %p261 = scmp.lt.s32.totalorder %s22, 1
      %s262 = scalar_select %p261, %s22, 1
      %s263 = smul.addr %s262, 23
      %s264 = smul.addr %s263, 8
      %s265 = scalar_lea.vmem %s1, %s264
      %p266 = pneg %p80
      %p267 = pneg %p77
      %p268 = pneg %p101
      %p269 = pneg %p98
      %p270 = pneg %p122
      %p271 = pneg %p119
      %p272 = pneg %p143
      %p273 = pneg %p140
      %p274 = pneg %p164
      %p275 = pneg %p161
      %p276 = pneg %p194
      %p277 = pneg %p191
      %s278 = smul.u32 %s21, 2
      %s279 = sadd.s32 %s278, %s22
      %p280 = scmp.lt.s32.totalorder %s279, 3
      %s281 = scalar_select %p280, %s279, 3
      %s282 = smul.addr %s281, 18
      %s283 = smul.addr %s282, 8
      %s284 = scalar_lea.vmem %s6, %s283
      %s285 = smul.u32 %s21, 2
      %s286 = sadd.s32 %s285, %s22
      %p287 = scmp.lt.s32.totalorder %s286, 3
      %s288 = scalar_select %p287, %s286, 3
      %s289 = smul.addr %s288, 23
      %s290 = smul.addr %s289, 8
      %s291 = scalar_lea.vmem %s0, %s290
      %s292 = smul.u32 %s21, 2
      %s293 = sadd.s32 %s292, %s22
      %p294 = scmp.lt.s32.totalorder %s22, 1
      %s295 = scalar_select %p294, %s22, 1
      %s296 = smul.addr %s295, 23
      %s297 = smul.addr %s296, 8
      %s298 = scalar_lea.vmem %s1, %s297
      %s299 = smul.u32 %s21, 2
      %s300 = sadd.s32 %s299, %s22
      %p301 = scmp.lt.s32.totalorder %s300, 3
      %s302 = scalar_select %p301, %s300, 3
      %s303 = smul.addr %s302, 18
      %s304 = smul.addr %s303, 8
      %s305 = scalar_lea.vmem %s6, %s304
      %s306 = smul.u32 %s21, 2
      %s307 = sadd.s32 %s306, %s22
      %s308 = sadd.s32 %s21, %s22
      %p309 = scmp.eq.s32.totalorder %s308, 0
      // Predicated region
      $region45: #{tpu_custom_call.1} parent=43 // pred_check
        %p310 = pneg %p309
      $region46: #{tpu_custom_call.1} parent=43 // pred_check_branch
        %312 = sbr.rel (%p310) target = $region48
      $region47: #{tpu_custom_call.1} parent=43 // pred_region
        %313 = vst [vmem:[#allocation2] sm:$0xff] 0.0
        %314 = vst [vmem:[#allocation2 + $0xbc] sm:$0xff] 0.0
      $region48: #{tpu_custom_call.1} parent=43 // pred_fallthru
        _
      %v315 = vld [vmem:[%s291] sm:$0xff]
      %v316 = vld [vmem:[%s291 + $0x8] sm:$0xff]
      %v317 = vld [vmem:[%s291 + $0x10] sm:$0xff]
      %v318 = vld [vmem:[%s291 + $0x18] sm:$0xff]
      %v319 = vld [vmem:[%s291 + $0x20] sm:$0xff]
      %v320 = vld [vmem:[%s291 + $0x28] sm:$0xff]
      %v321 = vld [vmem:[%s291 + $0x30] sm:$0xff]
      %v322 = vld [vmem:[%s291 + $0x38] sm:$0xff]
      %v323 = vld [vmem:[%s291 + $0x40] sm:$0xff]
      %v324 = vld [vmem:[%s291 + $0x48] sm:$0xff]
      %v325 = vld [vmem:[%s291 + $0x50] sm:$0xff]
      %v326 = vld [vmem:[%s291 + $0x58] sm:$0xff]
      %v327 = vld [vmem:[%s291 + $0x60] sm:$0xff]
      %v328 = vld [vmem:[%s291 + $0x68] sm:$0xff]
      %v329 = vld [vmem:[%s291 + $0x70] sm:$0xff]
      %v330 = vld [vmem:[%s291 + $0x78] sm:$0xff]
      %v331 = vld [vmem:[%s291 + $0x80] sm:$0xff]
      %v332 = vld [vmem:[%s291 + $0x88] sm:$0xff]
      %v333 = vld [vmem:[%s291 + $0x90] sm:$0xff]
      %v334 = vld [vmem:[%s291 + $0x98] sm:$0xff]
      %v335 = vld [vmem:[%s291 + $0xa0] sm:$0xff]
      %v336 = vld [vmem:[%s291 + $0xa8] sm:$0xff]
      %v337 = vld [vmem:[%s291 + $0xb0] sm:$0xf]
      %v338 = vld [vmem:[%s2] sm:$0xff]
      %v339 = vld [vmem:[%s2 + $0x8] sm:$0xff]
      %v340 = vld [vmem:[%s3] sm:$0x1]
      %v342 = vlaneseq
      %v343 = vshrl.u32 %v342, 7
      %v344 = vsub.s32 0, %v343
      %v345 = vrot.slane %v340, %v344
      %vm347 = vcmask 130048
      %v349 = vsel %vm347, %v315, 0
      %v352 = vsel %vm347, %v316, 0
      %v355 = vsel %vm347, %v317, 0
      %v358 = vsel %vm347, %v318, 0
      %v361 = vsel %vm347, %v319, 0
      %v364 = vsel %vm347, %v320, 0
      %v367 = vsel %vm347, %v321, 0
      %v370 = vsel %vm347, %v322, 0
      %v373 = vsel %vm347, %v323, 0
      %v376 = vsel %vm347, %v324, 0
      %v379 = vsel %vm347, %v325, 0
      %v382 = vsel %vm347, %v326, 0
      %v385 = vsel %vm347, %v327, 0
      %v388 = vsel %vm347, %v328, 0
      %v391 = vsel %vm347, %v329, 0
      %v394 = vsel %vm347, %v330, 0
      %v397 = vsel %vm347, %v331, 0
      %v400 = vsel %vm347, %v332, 0
      %v403 = vsel %vm347, %v333, 0
      %v406 = vsel %vm347, %v334, 0
      %v409 = vsel %vm347, %v335, 0
      %v412 = vsel %vm347, %v336, 0
      %v415 = vsel %vm347, %v337, 0
      %417 = vmatprep.subr.mxu0 0.0
      %418 = vmatpush1.msra.mxu0 %v338
      %419 = vmatprep.subr.mxu0 0.0
      %420 = vmatpush1.msra.mxu0 %v339
      %421 = vmatprep.subr.mxu0 0.0
      %422 = vmatpush1.msra.mxu0 0.0
      %423 = vmatprep.subr.mxu0 0.0
      %424 = vmatpush1.msra.mxu0 0.0
      %425 = vmatprep.subr.mxu0 0.0
      %426 = vmatpush1.msra.mxu0 0.0
      %427 = vmatprep.subr.mxu0 0.0
      %428 = vmatpush1.msra.mxu0 0.0
      %429 = vmatprep.subr.mxu0 0.0
      %430 = vmatpush1.msra.mxu0 0.0
      %431 = vmatprep.subr.mxu0 0.0
      %432 = vmatpush1.msra.mxu0 0.0
      %433 = vmatprep.subr.mxu0 0.0
      %434 = vmatpush1.msra.mxu0 0.0
      %435 = vmatprep.subr.mxu0 0.0
      %436 = vmatpush1.msra.mxu0 0.0
      %437 = vmatprep.subr.mxu0 0.0
      %438 = vmatpush1.msra.mxu0 0.0
      %439 = vmatprep.subr.mxu0 0.0
      %440 = vmatpush1.msra.mxu0 0.0
      %441 = vmatprep.subr.mxu0 0.0
      %442 = vmatpush1.msra.mxu0 0.0
      %443 = vmatprep.subr.mxu0 0.0
      %444 = vmatpush1.msra.mxu0 0.0
      %445 = vmatprep.subr.mxu0 0.0
      %446 = vmatpush1.msra.mxu0 0.0
      %447 = vmatprep.subr.mxu0 0.0
      %448 = vmatpush1.msra.mxu0 0.0
      %449 = vmatprep.subr.mxu0 0.0
      %450 = vmatpush1.msra.mxu0 0.0
      %451 = vmatprep.subr.mxu0 0.0
      %452 = vmatpush1.msra.mxu0 0.0
      %453 = vmatprep.subr.mxu0 0.0
      %454 = vmatpush1.msra.mxu0 0.0
      %455 = vmatprep.subr.mxu0 0.0
      %456 = vmatpush1.msra.mxu0 0.0
      %457 = vmatprep.subr.mxu0 0.0
      %458 = vmatpush1.msra.mxu0 0.0
      %459 = vmatprep.subr.mxu0 0.0
      %460 = vmatpush1.msra.mxu0 0.0
      %461 = vmatprep.subr.mxu0 0.0
      %462 = vmatpush1.msra.mxu0 0.0
      %463 = vmatprep.subr.mxu0 0.0
      %464 = vmatpush1.msra.mxu0 0.0
      %465 = vmatprep.subr.mxu0 0.0
      %466 = vmatpush1.msra.mxu0 0.0
      %467 = vmatprep.subr.mxu0 0.0
      %468 = vmatpush1.msra.mxu0 0.0
      %469 = vmatprep.subr.mxu0 0.0
      %470 = vmatpush1.msra.mxu0 0.0
      %471 = vmatprep.subr.mxu0 0.0
      %472 = vmatpush1.msra.mxu0 0.0
      %473 = vmatprep.subr.mxu0 0.0
      %474 = vmatpush1.msra.mxu0 0.0
      %475 = vmatprep.subr.mxu0 0.0
      %476 = vmatpush1.msra.mxu0 0.0
      %477 = vmatprep.subr.mxu0 0.0
      %478 = vmatpush1.msra.mxu0 0.0
      %479 = vmatprep.subr.mxu0 0.0
      %480 = vmatpush1.msra.mxu0 0.0
      %481 = vmatprep.mubr.f32.mxu0 0.0
      %482 = vmatmul.mubr.f32.gmra.mrb[0].mxu0 %v349
      %v483 = vpop.f32.mrb[0].mxu0
      %v484 = vadd.f32 %v345, %v483
      %v485 = vpop.f32.mrb[0].mxu0
      %486 = vmatprep.mubr.f32.mxu0 0.0
      %487 = vmatmul.mubr.f32.gmra.mrb[0].mxu0 %v352
      %v488 = vpop.f32.mrb[0].mxu0
      %v489 = vadd.f32 %v345, %v488
      %v490 = vpop.f32.mrb[0].mxu0
      %491 = vmatprep.mubr.f32.mxu0 0.0
      %492 = vmatmul.mubr.f32.gmra.mrb[0].mxu0 %v355
      %v493 = vpop.f32.mrb[0].mxu0
      %v494 = vadd.f32 %v345, %v493
      %v495 = vpop.f32.mrb[0].mxu0
      %496 = vmatprep.mubr.f32.mxu0 0.0
      %497 = vmatmul.mubr.f32.gmra.mrb[0].mxu0 %v358
      %v498 = vpop.f32.mrb[0].mxu0
      %v499 = vadd.f32 %v345, %v498
      %v500 = vpop.f32.mrb[0].mxu0
      %501 = vmatprep.mubr.f32.mxu0 0.0
      %502 = vmatmul.mubr.f32.gmra.mrb[0].mxu0 %v361
      %v503 = vpop.f32.mrb[0].mxu0
      %v504 = vadd.f32 %v345, %v503
      %v505 = vpop.f32.mrb[0].mxu0
      %506 = vmatprep.mubr.f32.mxu0 0.0
      %507 = vmatmul.mubr.f32.gmra.mrb[0].mxu0 %v364
      %v508 = vpop.f32.mrb[0].mxu0
      %v509 = vadd.f32 %v345, %v508
      %v510 = vpop.f32.mrb[0].mxu0
      %511 = vmatprep.mubr.f32.mxu0 0.0
      %512 = vmatmul.mubr.f32.gmra.mrb[0].mxu0 %v367
      %v513 = vpop.f32.mrb[0].mxu0
      %v514 = vadd.f32 %v345, %v513
      %v515 = vpop.f32.mrb[0].mxu0
      %516 = vmatprep.mubr.f32.mxu0 0.0
      %517 = vmatmul.mubr.f32.gmra.mrb[0].mxu0 %v370
      %v518 = vpop.f32.mrb[0].mxu0
      %v519 = vadd.f32 %v345, %v518
      %v520 = vpop.f32.mrb[0].mxu0
      %521 = vmatprep.mubr.f32.mxu0 0.0
      %522 = vmatmul.mubr.f32.gmra.mrb[0].mxu0 %v373
      %v523 = vpop.f32.mrb[0].mxu0
      %v524 = vadd.f32 %v345, %v523
      %v525 = vpop.f32.mrb[0].mxu0
      %526 = vmatprep.mubr.f32.mxu0 0.0
      %527 = vmatmul.mubr.f32.gmra.mrb[0].mxu0 %v376
      %v528 = vpop.f32.mrb[0].mxu0
      %v529 = vadd.f32 %v345, %v528
      %v530 = vpop.f32.mrb[0].mxu0
      %531 = vmatprep.mubr.f32.mxu0 0.0
      %532 = vmatmul.mubr.f32.gmra.mrb[0].mxu0 %v379
      %v533 = vpop.f32.mrb[0].mxu0
      %v534 = vadd.f32 %v345, %v533
      %v535 = vpop.f32.mrb[0].mxu0
      %536 = vmatprep.mubr.f32.mxu0 0.0
      %537 = vmatmul.mubr.f32.gmra.mrb[0].mxu0 %v382
      %v538 = vpop.f32.mrb[0].mxu0
      %v539 = vadd.f32 %v345, %v538
      %v540 = vpop.f32.mrb[0].mxu0
      %541 = vmatprep.mubr.f32.mxu0 0.0
      %542 = vmatmul.mubr.f32.gmra.mrb[0].mxu0 %v385
      %v543 = vpop.f32.mrb[0].mxu0
      %v544 = vadd.f32 %v345, %v543
      %v545 = vpop.f32.mrb[0].mxu0
      %546 = vmatprep.mubr.f32.mxu0 0.0
      %547 = vmatmul.mubr.f32.gmra.mrb[0].mxu0 %v388
      %v548 = vpop.f32.mrb[0].mxu0
      %v549 = vadd.f32 %v345, %v548
      %v550 = vpop.f32.mrb[0].mxu0
      %551 = vmatprep.mubr.f32.mxu0 0.0
      %552 = vmatmul.mubr.f32.gmra.mrb[0].mxu0 %v391
      %v553 = vpop.f32.mrb[0].mxu0
      %v554 = vadd.f32 %v345, %v553
      %v555 = vpop.f32.mrb[0].mxu0
      %556 = vmatprep.mubr.f32.mxu0 0.0
      %557 = vmatmul.mubr.f32.gmra.mrb[0].mxu0 %v394
      %v558 = vpop.f32.mrb[0].mxu0
      %v559 = vadd.f32 %v345, %v558
      %v560 = vpop.f32.mrb[0].mxu0
      %561 = vmatprep.mubr.f32.mxu0 0.0
      %562 = vmatmul.mubr.f32.gmra.mrb[0].mxu0 %v397
      %v563 = vpop.f32.mrb[0].mxu0
      %v564 = vadd.f32 %v345, %v563
      %v565 = vpop.f32.mrb[0].mxu0
      %566 = vmatprep.mubr.f32.mxu0 0.0
      %567 = vmatmul.mubr.f32.gmra.mrb[0].mxu0 %v400
      %v568 = vpop.f32.mrb[0].mxu0
      %v569 = vadd.f32 %v345, %v568
      %v570 = vpop.f32.mrb[0].mxu0
      %571 = vmatprep.mubr.f32.mxu0 0.0
      %572 = vmatmul.mubr.f32.gmra.mrb[0].mxu0 %v403
      %v573 = vpop.f32.mrb[0].mxu0
      %v574 = vadd.f32 %v345, %v573
      %v575 = vpop.f32.mrb[0].mxu0
      %576 = vmatprep.mubr.f32.mxu0 0.0
      %577 = vmatmul.mubr.f32.gmra.mrb[0].mxu0 %v406
      %v578 = vpop.f32.mrb[0].mxu0
      %v579 = vadd.f32 %v345, %v578
      %v580 = vpop.f32.mrb[0].mxu0
      %581 = vmatprep.mubr.f32.mxu0 0.0
      %582 = vmatmul.mubr.f32.gmra.mrb[0].mxu0 %v409
      %v583 = vpop.f32.mrb[0].mxu0
      %v584 = vadd.f32 %v345, %v583
      %v585 = vpop.f32.mrb[0].mxu0
      %586 = vmatprep.mubr.f32.mxu0 0.0
      %587 = vmatmul.mubr.f32.gmra.mrb[0].mxu0 %v412
      %v588 = vpop.f32.mrb[0].mxu0
      %v589 = vadd.f32 %v345, %v588
      %v590 = vpop.f32.mrb[0].mxu0
      %591 = vmatprep.mubr.f32.mxu0 0.0
      %592 = vmatmul.mubr.f32.gmra.mrb[0].mxu0 %v415
      %v593 = vpop.f32.mrb[0].mxu0
      %v594 = vadd.f32 %v345, %v593
      %v595 = vpop.f32.mrb[0].mxu0
      %596 = vdwg.mxu0
      %v597 = vld [vmem:[%s298] sm:$0xff]
      %v598 = vld [vmem:[%s298 + $0x8] sm:$0xff]
      %v599 = vld [vmem:[%s298 + $0x10] sm:$0xff]
      %v600 = vld [vmem:[%s298 + $0x18] sm:$0xff]
      %v601 = vld [vmem:[%s298 + $0x20] sm:$0xff]
      %v602 = vld [vmem:[%s298 + $0x28] sm:$0xff]
      %v603 = vld [vmem:[%s298 + $0x30] sm:$0xff]
      %v604 = vld [vmem:[%s298 + $0x38] sm:$0xff]
      %v605 = vld [vmem:[%s298 + $0x40] sm:$0xff]
      %v606 = vld [vmem:[%s298 + $0x48] sm:$0xff]
      %v607 = vld [vmem:[%s298 + $0x50] sm:$0xff]
      %v608 = vld [vmem:[%s298 + $0x58] sm:$0xff]
      %v609 = vld [vmem:[%s298 + $0x60] sm:$0xff]
      %v610 = vld [vmem:[%s298 + $0x68] sm:$0xff]
      %v611 = vld [vmem:[%s298 + $0x70] sm:$0xff]
      %v612 = vld [vmem:[%s298 + $0x78] sm:$0xff]
      %v613 = vld [vmem:[%s298 + $0x80] sm:$0xff]
      %v614 = vld [vmem:[%s298 + $0x88] sm:$0xff]
      %v615 = vld [vmem:[%s298 + $0x90] sm:$0xff]
      %v616 = vld [vmem:[%s298 + $0x98] sm:$0xff]
      %v617 = vld [vmem:[%s298 + $0xa0] sm:$0xff]
      %v618 = vld [vmem:[%s298 + $0xa8] sm:$0xff]
      %v619 = vld [vmem:[%s298 + $0xb0] sm:$0xf]
      %621 = vset.pattern.permute.xlu0 0
      %622 = vperm.xlu0 %621, %v597
      %v623 = vpop.permute.xlu0 %622
      %626 = vset.pattern.permute.xlu0 0
      %627 = vperm.xlu0 %626, %v598
      %v628 = vpop.permute.xlu0 %627
      %631 = vset.pattern.permute.xlu0 0
      %632 = vperm.xlu0 %631, %v599
      %v633 = vpop.permute.xlu0 %632
      %636 = vset.pattern.permute.xlu0 0
      %637 = vperm.xlu0 %636, %v600
      %v638 = vpop.permute.xlu0 %637
      %641 = vset.pattern.permute.xlu0 0
      %642 = vperm.xlu0 %641, %v601
      %v643 = vpop.permute.xlu0 %642
      %646 = vset.pattern.permute.xlu0 0
      %647 = vperm.xlu0 %646, %v602
      %v648 = vpop.permute.xlu0 %647
      %651 = vset.pattern.permute.xlu0 0
      %652 = vperm.xlu0 %651, %v603
      %v653 = vpop.permute.xlu0 %652
      %656 = vset.pattern.permute.xlu0 0
      %657 = vperm.xlu0 %656, %v604
      %v658 = vpop.permute.xlu0 %657
      %661 = vset.pattern.permute.xlu0 0
      %662 = vperm.xlu0 %661, %v605
      %v663 = vpop.permute.xlu0 %662
      %666 = vset.pattern.permute.xlu0 0
      %667 = vperm.xlu0 %666, %v606
      %v668 = vpop.permute.xlu0 %667
      %671 = vset.pattern.permute.xlu0 0
      %672 = vperm.xlu0 %671, %v607
      %v673 = vpop.permute.xlu0 %672
      %676 = vset.pattern.permute.xlu0 0
      %677 = vperm.xlu0 %676, %v608
      %v678 = vpop.permute.xlu0 %677
      %681 = vset.pattern.permute.xlu0 0
      %682 = vperm.xlu0 %681, %v609
      %v683 = vpop.permute.xlu0 %682
      %686 = vset.pattern.permute.xlu0 0
      %687 = vperm.xlu0 %686, %v610
      %v688 = vpop.permute.xlu0 %687
      %691 = vset.pattern.permute.xlu0 0
      %692 = vperm.xlu0 %691, %v611
      %v693 = vpop.permute.xlu0 %692
      %696 = vset.pattern.permute.xlu0 0
      %697 = vperm.xlu0 %696, %v612
      %v698 = vpop.permute.xlu0 %697
      %701 = vset.pattern.permute.xlu0 0
      %702 = vperm.xlu0 %701, %v613
      %v703 = vpop.permute.xlu0 %702
      %706 = vset.pattern.permute.xlu0 0
      %707 = vperm.xlu0 %706, %v614
      %v708 = vpop.permute.xlu0 %707
      %711 = vset.pattern.permute.xlu0 0
      %712 = vperm.xlu0 %711, %v615
      %v713 = vpop.permute.xlu0 %712
      %716 = vset.pattern.permute.xlu0 0
      %717 = vperm.xlu0 %716, %v616
      %v718 = vpop.permute.xlu0 %717
      %721 = vset.pattern.permute.xlu0 0
      %722 = vperm.xlu0 %721, %v617
      %v723 = vpop.permute.xlu0 %722
      %726 = vset.pattern.permute.xlu0 0
      %727 = vperm.xlu0 %726, %v618
      %v728 = vpop.permute.xlu0 %727
      %731 = vset.pattern.permute.xlu0 0
      %732 = vperm.xlu0 %731, %v619
      %v733 = vpop.permute.xlu0 %732
      %v735 = vadd.f32 %v484, %v623
      %v736 = vadd.f32 %v489, %v628
      %v737 = vadd.f32 %v494, %v633
      %v738 = vadd.f32 %v499, %v638
      %v739 = vadd.f32 %v504, %v643
      %v740 = vadd.f32 %v509, %v648
      %v741 = vadd.f32 %v514, %v653
      %v742 = vadd.f32 %v519, %v658
      %v743 = vadd.f32 %v524, %v663
      %v744 = vadd.f32 %v529, %v668
      %v745 = vadd.f32 %v534, %v673
      %v746 = vadd.f32 %v539, %v678
      %v747 = vadd.f32 %v544, %v683
      %v748 = vadd.f32 %v549, %v688
      %v749 = vadd.f32 %v554, %v693
      %v750 = vadd.f32 %v559, %v698
      %v751 = vadd.f32 %v564, %v703
      %v752 = vadd.f32 %v569, %v708
      %v753 = vadd.f32 %v574, %v713
      %v754 = vadd.f32 %v579, %v718
      %v755 = vadd.f32 %v584, %v723
      %v756 = vadd.f32 %v589, %v728
      %v757 = vadd.f32 %v594, %v733
      %v758 = vmax.f32 %v735, 0.0
      %v759 = vmax.f32 %v736, 0.0
      %v760 = vmax.f32 %v737, 0.0
      %v761 = vmax.f32 %v738, 0.0
      %v762 = vmax.f32 %v739, 0.0
      %v763 = vmax.f32 %v740, 0.0
      %v764 = vmax.f32 %v741, 0.0
      %v765 = vmax.f32 %v742, 0.0
      %v766 = vmax.f32 %v743, 0.0
      %v767 = vmax.f32 %v744, 0.0
      %v768 = vmax.f32 %v745, 0.0
      %v769 = vmax.f32 %v746, 0.0
      %v770 = vmax.f32 %v747, 0.0
      %v771 = vmax.f32 %v748, 0.0
      %v772 = vmax.f32 %v749, 0.0
      %v773 = vmax.f32 %v750, 0.0
      %v774 = vmax.f32 %v751, 0.0
      %v775 = vmax.f32 %v752, 0.0
      %v776 = vmax.f32 %v753, 0.0
      %v777 = vmax.f32 %v754, 0.0
      %v778 = vmax.f32 %v755, 0.0
      %v779 = vmax.f32 %v756, 0.0
      %v780 = vmax.f32 %v757, 0.0
      %781 = vst [vmem:[#allocation2 + $0x8] sm:$0xff] %v758
      %782 = vst [vmem:[#allocation2 + $0x10] sm:$0xff] %v759
      %783 = vst [vmem:[#allocation2 + $0x18] sm:$0xff] %v760
      %784 = vst [vmem:[#allocation2 + $0x20] sm:$0xff] %v761
      %785 = vst [vmem:[#allocation2 + $0x28] sm:$0xff] %v762
      %786 = vst [vmem:[#allocation2 + $0x30] sm:$0xff] %v763
      %787 = vst [vmem:[#allocation2 + $0x38] sm:$0xff] %v764
      %788 = vst [vmem:[#allocation2 + $0x40] sm:$0xff] %v765
      %789 = vst [vmem:[#allocation2 + $0x48] sm:$0xff] %v766
      %790 = vst [vmem:[#allocation2 + $0x50] sm:$0xff] %v767
      %791 = vst [vmem:[#allocation2 + $0x58] sm:$0xff] %v768
      %792 = vst [vmem:[#allocation2 + $0x60] sm:$0xff] %v769
      %793 = vst [vmem:[#allocation2 + $0x68] sm:$0xff] %v770
      %794 = vst [vmem:[#allocation2 + $0x70] sm:$0xff] %v771
      %795 = vst [vmem:[#allocation2 + $0x78] sm:$0xff] %v772
      %796 = vst [vmem:[#allocation2 + $0x80] sm:$0xff] %v773
      %797 = vst [vmem:[#allocation2 + $0x88] sm:$0xff] %v774
      %798 = vst [vmem:[#allocation2 + $0x90] sm:$0xff] %v775
      %799 = vst [vmem:[#allocation2 + $0x98] sm:$0xff] %v776
      %800 = vst [vmem:[#allocation2 + $0xa0] sm:$0xff] %v777
      %801 = vst [vmem:[#allocation2 + $0xa8] sm:$0xff] %v778
      %802 = vst [vmem:[#allocation2 + $0xb0] sm:$0xff] %v779
      %803 = vst [vmem:[#allocation2 + $0xb8] sm:$0xf] %v780
      %v804 = vld [vmem:[#allocation2 + $0x7] sm:$0xff]
      %v805 = vld [vmem:[#allocation2 + $0xf] sm:$0xff]
      %v806 = vld [vmem:[#allocation2 + $0x17] sm:$0xff]
      %v807 = vld [vmem:[#allocation2 + $0x1f] sm:$0xff]
      %v808 = vld [vmem:[#allocation2 + $0x27] sm:$0xff]
      %v809 = vld [vmem:[#allocation2 + $0x2f] sm:$0xff]
      %v810 = vld [vmem:[#allocation2 + $0x37] sm:$0xff]
      %v811 = vld [vmem:[#allocation2 + $0x3f] sm:$0xff]
      %v812 = vld [vmem:[#allocation2 + $0x47] sm:$0xff]
      %v813 = vld [vmem:[#allocation2 + $0x4f] sm:$0xff]
      %v814 = vld [vmem:[#allocation2 + $0x57] sm:$0xff]
      %v815 = vld [vmem:[#allocation2 + $0x5f] sm:$0xff]
      %v816 = vld [vmem:[#allocation2 + $0x67] sm:$0xff]
      %v817 = vld [vmem:[#allocation2 + $0x6f] sm:$0xff]
      %v818 = vld [vmem:[#allocation2 + $0x77] sm:$0xff]
      %v819 = vld [vmem:[#allocation2 + $0x7f] sm:$0xff]
      %v820 = vld [vmem:[#allocation2 + $0x87] sm:$0xff]
      %v821 = vld [vmem:[#allocation2 + $0x8f] sm:$0xff]
      %v822 = vld [vmem:[%s4] sm:$0xff]
      %v823 = vld [vmem:[%s4 + $0x8] sm:$0xff]
      %v824 = vld [vmem:[%s4 + $0x10] sm:$0xff]
      %v825 = vld [vmem:[%s4 + $0x18] sm:$0xff]
      %v826 = vld [vmem:[%s4 + $0x20] sm:$0xff]
      %v827 = vld [vmem:[%s4 + $0x28] sm:$0xff]
      %v828 = vld [vmem:[%s4 + $0x30] sm:$0xff]
      %v829 = vld [vmem:[%s4 + $0x38] sm:$0xff]
      %v830 = vld [vmem:[%s4 + $0x40] sm:$0xff]
      %v831 = vld [vmem:[%s4 + $0x48] sm:$0xff]
      %v832 = vld [vmem:[%s4 + $0x50] sm:$0xff]
      %v833 = vld [vmem:[%s4 + $0x58] sm:$0xff]
      %v834 = vld [vmem:[%s4 + $0x60] sm:$0xff]
      %v835 = vld [vmem:[%s4 + $0x68] sm:$0xff]
      %v836 = vld [vmem:[%s4 + $0x70] sm:$0xff]
      %v837 = vld [vmem:[%s4 + $0x78] sm:$0xff]
      %v838 = vld [vmem:[#allocation2 + $0x8] sm:$0xff]
      %v839 = vld [vmem:[#allocation2 + $0x10] sm:$0xff]
      %v840 = vld [vmem:[#allocation2 + $0x18] sm:$0xff]
      %v841 = vld [vmem:[#allocation2 + $0x20] sm:$0xff]
      %v842 = vld [vmem:[#allocation2 + $0x28] sm:$0xff]
      %v843 = vld [vmem:[#allocation2 + $0x30] sm:$0xff]
      %v844 = vld [vmem:[#allocation2 + $0x38] sm:$0xff]
      %v845 = vld [vmem:[#allocation2 + $0x40] sm:$0xff]
      %v846 = vld [vmem:[#allocation2 + $0x48] sm:$0xff]
      %v847 = vld [vmem:[#allocation2 + $0x50] sm:$0xff]
      %v848 = vld [vmem:[#allocation2 + $0x58] sm:$0xff]
      %v849 = vld [vmem:[#allocation2 + $0x60] sm:$0xff]
      %v850 = vld [vmem:[#allocation2 + $0x68] sm:$0xff]
      %v851 = vld [vmem:[#allocation2 + $0x70] sm:$0xff]
      %v852 = vld [vmem:[#allocation2 + $0x78] sm:$0xff]
      %v853 = vld [vmem:[#allocation2 + $0x80] sm:$0xff]
      %v854 = vld [vmem:[#allocation2 + $0x88] sm:$0xff]
      %v855 = vld [vmem:[#allocation2 + $0x90] sm:$0xff]
      %s856 = scalar_lea.vmem %s4, 128
      %v857 = vld [vmem:[%s856] sm:$0xff]
      %v858 = vld [vmem:[%s856 + $0x8] sm:$0xff]
      %v859 = vld [vmem:[%s856 + $0x10] sm:$0xff]
      %v860 = vld [vmem:[%s856 + $0x18] sm:$0xff]
      %v861 = vld [vmem:[%s856 + $0x20] sm:$0xff]
      %v862 = vld [vmem:[%s856 + $0x28] sm:$0xff]
      %v863 = vld [vmem:[%s856 + $0x30] sm:$0xff]
      %v864 = vld [vmem:[%s856 + $0x38] sm:$0xff]
      %v865 = vld [vmem:[%s856 + $0x40] sm:$0xff]
      %v866 = vld [vmem:[%s856 + $0x48] sm:$0xff]
      %v867 = vld [vmem:[%s856 + $0x50] sm:$0xff]
      %v868 = vld [vmem:[%s856 + $0x58] sm:$0xff]
      %v869 = vld [vmem:[%s856 + $0x60] sm:$0xff]
      %v870 = vld [vmem:[%s856 + $0x68] sm:$0xff]
      %v871 = vld [vmem:[%s856 + $0x70] sm:$0xff]
      %v872 = vld [vmem:[%s856 + $0x78] sm:$0xff]
      %873 = vmatprep.subr.mxu0 0.0
      %874 = vmatpush1.msra.mxu0 %v857
      %875 = vmatprep.subr.mxu0 0.0
      %876 = vmatpush1.msra.mxu0 %v858
      %877 = vmatprep.subr.mxu0 0.0
      %878 = vmatpush1.msra.mxu0 %v859
      %879 = vmatprep.subr.mxu0 0.0
      %880 = vmatpush1.msra.mxu0 %v860
      %881 = vmatprep.subr.mxu0 0.0
      %882 = vmatpush1.msra.mxu0 %v861
      %883 = vmatprep.subr.mxu0 0.0
      %884 = vmatpush1.msra.mxu0 %v862
      %885 = vmatprep.subr.mxu0 0.0
      %886 = vmatpush1.msra.mxu0 %v863
      %887 = vmatprep.subr.mxu0 0.0
      %888 = vmatpush1.msra.mxu0 %v864
      %889 = vmatprep.subr.mxu0 0.0
      %890 = vmatpush1.msra.mxu0 %v865
      %891 = vmatprep.subr.mxu0 0.0
      %892 = vmatpush1.msra.mxu0 %v866
      %893 = vmatprep.subr.mxu0 0.0
      %894 = vmatpush1.msra.mxu0 %v867
      %895 = vmatprep.subr.mxu0 0.0
      %896 = vmatpush1.msra.mxu0 %v868
      %897 = vmatprep.subr.mxu0 0.0
      %898 = vmatpush1.msra.mxu0 %v869
      %899 = vmatprep.subr.mxu0 0.0
      %900 = vmatpush1.msra.mxu0 %v870
      %901 = vmatprep.subr.mxu0 0.0
      %902 = vmatpush1.msra.mxu0 %v871
      %903 = vmatprep.subr.mxu0 0.0
      %904 = vmatpush1.msra.mxu0 %v872
      %905 = vmatprep.subr.mxu0 0.0
      %906 = vmatpush1.msra.mxu0 0.0
      %907 = vmatprep.subr.mxu0 0.0
      %908 = vmatpush1.msra.mxu0 0.0
      %909 = vmatprep.subr.mxu0 0.0
      %910 = vmatpush1.msra.mxu0 0.0
      %911 = vmatprep.subr.mxu0 0.0
      %912 = vmatpush1.msra.mxu0 0.0
      %913 = vmatprep.subr.mxu0 0.0
      %914 = vmatpush1.msra.mxu0 0.0
      %915 = vmatprep.subr.mxu0 0.0
      %916 = vmatpush1.msra.mxu0 0.0
      %917 = vmatprep.subr.mxu0 0.0
      %918 = vmatpush1.msra.mxu0 0.0
      %919 = vmatprep.subr.mxu0 0.0
      %920 = vmatpush1.msra.mxu0 0.0
      %921 = vmatprep.subr.mxu0 0.0
      %922 = vmatpush1.msra.mxu0 0.0
      %923 = vmatprep.subr.mxu0 0.0
      %924 = vmatpush1.msra.mxu0 0.0
      %925 = vmatprep.subr.mxu0 0.0
      %926 = vmatpush1.msra.mxu0 0.0
      %927 = vmatprep.subr.mxu0 0.0
      %928 = vmatpush1.msra.mxu0 0.0
      %929 = vmatprep.subr.mxu0 0.0
      %930 = vmatpush1.msra.mxu0 0.0
      %931 = vmatprep.subr.mxu0 0.0
      %932 = vmatpush1.msra.mxu0 0.0
      %933 = vmatprep.subr.mxu0 0.0
      %934 = vmatpush1.msra.mxu0 0.0
      %935 = vmatprep.subr.mxu0 0.0
      %936 = vmatpush1.msra.mxu0 0.0
      %937 = vmatprep.mubr.f32.mxu0 0.0
      %938 = vmatmul.mubr.f32.gmra.mrb[0].mxu0 %v838
      %v939 = vpop.f32.mrb[0].mxu0
      %v940 = vadd.f32 0.0, %v939
      %v941 = vpop.f32.mrb[0].mxu0
      %942 = vmatprep.mubr.f32.mxu0 0.0
      %943 = vmatmul.mubr.f32.gmra.mrb[0].mxu0 %v839
      %v944 = vpop.f32.mrb[0].mxu0
      %v945 = vadd.f32 0.0, %v944
      %v946 = vpop.f32.mrb[0].mxu0
      %947 = vmatprep.mubr.f32.mxu0 0.0
      %948 = vmatmul.mubr.f32.gmra.mrb[0].mxu0 %v840
      %v949 = vpop.f32.mrb[0].mxu0
      %v950 = vadd.f32 0.0, %v949
      %v951 = vpop.f32.mrb[0].mxu0
      %952 = vmatprep.mubr.f32.mxu0 0.0
      %953 = vmatmul.mubr.f32.gmra.mrb[0].mxu0 %v841
      %v954 = vpop.f32.mrb[0].mxu0
      %v955 = vadd.f32 0.0, %v954
      %v956 = vpop.f32.mrb[0].mxu0
      %957 = vmatprep.mubr.f32.mxu0 0.0
      %958 = vmatmul.mubr.f32.gmra.mrb[0].mxu0 %v842
      %v959 = vpop.f32.mrb[0].mxu0
      %v960 = vadd.f32 0.0, %v959
      %v961 = vpop.f32.mrb[0].mxu0
      %962 = vmatprep.mubr.f32.mxu0 0.0
      %963 = vmatmul.mubr.f32.gmra.mrb[0].mxu0 %v843
      %v964 = vpop.f32.mrb[0].mxu0
      %v965 = vadd.f32 0.0, %v964
      %v966 = vpop.f32.mrb[0].mxu0
      %967 = vmatprep.mubr.f32.mxu0 0.0
      %968 = vmatmul.mubr.f32.gmra.mrb[0].mxu0 %v844
      %v969 = vpop.f32.mrb[0].mxu0
      %v970 = vadd.f32 0.0, %v969
      %v971 = vpop.f32.mrb[0].mxu0
      %972 = vmatprep.mubr.f32.mxu0 0.0
      %973 = vmatmul.mubr.f32.gmra.mrb[0].mxu0 %v845
      %v974 = vpop.f32.mrb[0].mxu0
      %v975 = vadd.f32 0.0, %v974
      %v976 = vpop.f32.mrb[0].mxu0
      %977 = vmatprep.mubr.f32.mxu0 0.0
      %978 = vmatmul.mubr.f32.gmra.mrb[0].mxu0 %v846
      %v979 = vpop.f32.mrb[0].mxu0
      %v980 = vadd.f32 0.0, %v979
      %v981 = vpop.f32.mrb[0].mxu0
      %982 = vmatprep.mubr.f32.mxu0 0.0
      %983 = vmatmul.mubr.f32.gmra.mrb[0].mxu0 %v847
      %v984 = vpop.f32.mrb[0].mxu0
      %v985 = vadd.f32 0.0, %v984
      %v986 = vpop.f32.mrb[0].mxu0
      %987 = vmatprep.mubr.f32.mxu0 0.0
      %988 = vmatmul.mubr.f32.gmra.mrb[0].mxu0 %v848
      %v989 = vpop.f32.mrb[0].mxu0
      %v990 = vadd.f32 0.0, %v989
      %v991 = vpop.f32.mrb[0].mxu0
      %992 = vmatprep.mubr.f32.mxu0 0.0
      %993 = vmatmul.mubr.f32.gmra.mrb[0].mxu0 %v849
      %v994 = vpop.f32.mrb[0].mxu0
      %v995 = vadd.f32 0.0, %v994
      %v996 = vpop.f32.mrb[0].mxu0
      %997 = vmatprep.mubr.f32.mxu0 0.0
      %998 = vmatmul.mubr.f32.gmra.mrb[0].mxu0 %v850
      %v999 = vpop.f32.mrb[0].mxu0
      %v1000 = vadd.f32 0.0, %v999
      %v1001 = vpop.f32.mrb[0].mxu0
      %1002 = vmatprep.mubr.f32.mxu0 0.0
      %1003 = vmatmul.mubr.f32.gmra.mrb[0].mxu0 %v851
      %v1004 = vpop.f32.mrb[0].mxu0
      %v1005 = vadd.f32 0.0, %v1004
      %v1006 = vpop.f32.mrb[0].mxu0
      %1007 = vmatprep.mubr.f32.mxu0 0.0
      %1008 = vmatmul.mubr.f32.gmra.mrb[0].mxu0 %v852
      %v1009 = vpop.f32.mrb[0].mxu0
      %v1010 = vadd.f32 0.0, %v1009
      %v1011 = vpop.f32.mrb[0].mxu0
      %1012 = vmatprep.mubr.f32.mxu0 0.0
      %1013 = vmatmul.mubr.f32.gmra.mrb[0].mxu0 %v853
      %v1014 = vpop.f32.mrb[0].mxu0
      %v1015 = vadd.f32 0.0, %v1014
      %v1016 = vpop.f32.mrb[0].mxu0
      %1017 = vmatprep.mubr.f32.mxu0 0.0
      %1018 = vmatmul.mubr.f32.gmra.mrb[0].mxu0 %v854
      %v1019 = vpop.f32.mrb[0].mxu0
      %v1020 = vadd.f32 0.0, %v1019
      %v1021 = vpop.f32.mrb[0].mxu0
      %1022 = vmatprep.mubr.f32.mxu0 0.0
      %1023 = vmatmul.mubr.f32.gmra.mrb[0].mxu0 %v855
      %v1024 = vpop.f32.mrb[0].mxu0
      %v1025 = vadd.f32 0.0, %v1024
      %v1026 = vpop.f32.mrb[0].mxu0
      %1027 = vdwg.mxu0
      %1028 = vmatprep.subr.mxu0 0.0
      %1029 = vmatpush1.msra.mxu0 %v822
      %1030 = vmatprep.subr.mxu0 0.0
      %1031 = vmatpush1.msra.mxu0 %v823
      %1032 = vmatprep.subr.mxu0 0.0
      %1033 = vmatpush1.msra.mxu0 %v824
      %1034 = vmatprep.subr.mxu0 0.0
      %1035 = vmatpush1.msra.mxu0 %v825
      %1036 = vmatprep.subr.mxu0 0.0
      %1037 = vmatpush1.msra.mxu0 %v826
      %1038 = vmatprep.subr.mxu0 0.0
      %1039 = vmatpush1.msra.mxu0 %v827
      %1040 = vmatprep.subr.mxu0 0.0
      %1041 = vmatpush1.msra.mxu0 %v828
      %1042 = vmatprep.subr.mxu0 0.0
      %1043 = vmatpush1.msra.mxu0 %v829
      %1044 = vmatprep.subr.mxu0 0.0
      %1045 = vmatpush1.msra.mxu0 %v830
      %1046 = vmatprep.subr.mxu0 0.0
      %1047 = vmatpush1.msra.mxu0 %v831
      %1048 = vmatprep.subr.mxu0 0.0
      %1049 = vmatpush1.msra.mxu0 %v832
      %1050 = vmatprep.subr.mxu0 0.0
      %1051 = vmatpush1.msra.mxu0 %v833
      %1052 = vmatprep.subr.mxu0 0.0
      %1053 = vmatpush1.msra.mxu0 %v834
      %1054 = vmatprep.subr.mxu0 0.0
      %1055 = vmatpush1.msra.mxu0 %v835
      %1056 = vmatprep.subr.mxu0 0.0
      %1057 = vmatpush1.msra.mxu0 %v836
      %1058 = vmatprep.subr.mxu0 0.0
      %1059 = vmatpush1.msra.mxu0 %v837
      %1060 = vmatprep.subr.mxu0 0.0
      %1061 = vmatpush1.msra.mxu0 0.0
      %1062 = vmatprep.subr.mxu0 0.0
      %1063 = vmatpush1.msra.mxu0 0.0
      %1064 = vmatprep.subr.mxu0 0.0
      %1065 = vmatpush1.msra.mxu0 0.0
      %1066 = vmatprep.subr.mxu0 0.0
      %1067 = vmatpush1.msra.mxu0 0.0
      %1068 = vmatprep.subr.mxu0 0.0
      %1069 = vmatpush1.msra.mxu0 0.0
      %1070 = vmatprep.subr.mxu0 0.0
      %1071 = vmatpush1.msra.mxu0 0.0
      %1072 = vmatprep.subr.mxu0 0.0
      %1073 = vmatpush1.msra.mxu0 0.0
      %1074 = vmatprep.subr.mxu0 0.0
      %1075 = vmatpush1.msra.mxu0 0.0
      %1076 = vmatprep.subr.mxu0 0.0
      %1077 = vmatpush1.msra.mxu0 0.0
      %1078 = vmatprep.subr.mxu0 0.0
      %1079 = vmatpush1.msra.mxu0 0.0
      %1080 = vmatprep.subr.mxu0 0.0
      %1081 = vmatpush1.msra.mxu0 0.0
      %1082 = vmatprep.subr.mxu0 0.0
      %1083 = vmatpush1.msra.mxu0 0.0
      %1084 = vmatprep.subr.mxu0 0.0
      %1085 = vmatpush1.msra.mxu0 0.0
      %1086 = vmatprep.subr.mxu0 0.0
      %1087 = vmatpush1.msra.mxu0 0.0
      %1088 = vmatprep.subr.mxu0 0.0
      %1089 = vmatpush1.msra.mxu0 0.0
      %1090 = vmatprep.subr.mxu0 0.0
      %1091 = vmatpush1.msra.mxu0 0.0
      %1092 = vmatprep.mubr.f32.mxu0 0.0
      %1093 = vmatmul.mubr.f32.gmra.mrb[0].mxu0 %v804
      %v1094 = vpop.f32.mrb[0].mxu0
      %v1095 = vadd.f32 %v940, %v1094
      %v1096 = vpop.f32.mrb[0].mxu0
      %1097 = vmatprep.mubr.f32.mxu0 0.0
      %1098 = vmatmul.mubr.f32.gmra.mrb[0].mxu0 %v805
      %v1099 = vpop.f32.mrb[0].mxu0
      %v1100 = vadd.f32 %v945, %v1099
      %v1101 = vpop.f32.mrb[0].mxu0
      %1102 = vmatprep.mubr.f32.mxu0 0.0
      %1103 = vmatmul.mubr.f32.gmra.mrb[0].mxu0 %v806
      %v1104 = vpop.f32.mrb[0].mxu0
      %v1105 = vadd.f32 %v950, %v1104
      %v1106 = vpop.f32.mrb[0].mxu0
      %1107 = vmatprep.mubr.f32.mxu0 0.0
      %1108 = vmatmul.mubr.f32.gmra.mrb[0].mxu0 %v807
      %v1109 = vpop.f32.mrb[0].mxu0
      %v1110 = vadd.f32 %v955, %v1109
      %v1111 = vpop.f32.mrb[0].mxu0
      %1112 = vmatprep.mubr.f32.mxu0 0.0
      %1113 = vmatmul.mubr.f32.gmra.mrb[0].mxu0 %v808
      %v1114 = vpop.f32.mrb[0].mxu0
      %v1115 = vadd.f32 %v960, %v1114
      %v1116 = vpop.f32.mrb[0].mxu0
      %1117 = vmatprep.mubr.f32.mxu0 0.0
      %1118 = vmatmul.mubr.f32.gmra.mrb[0].mxu0 %v809
      %v1119 = vpop.f32.mrb[0].mxu0
      %v1120 = vadd.f32 %v965, %v1119
      %v1121 = vpop.f32.mrb[0].mxu0
      %1122 = vmatprep.mubr.f32.mxu0 0.0
      %1123 = vmatmul.mubr.f32.gmra.mrb[0].mxu0 %v810
      %v1124 = vpop.f32.mrb[0].mxu0
      %v1125 = vadd.f32 %v970, %v1124
      %v1126 = vpop.f32.mrb[0].mxu0
      %1127 = vmatprep.mubr.f32.mxu0 0.0
      %1128 = vmatmul.mubr.f32.gmra.mrb[0].mxu0 %v811
      %v1129 = vpop.f32.mrb[0].mxu0
      %v1130 = vadd.f32 %v975, %v1129
      %v1131 = vpop.f32.mrb[0].mxu0
      %1132 = vmatprep.mubr.f32.mxu0 0.0
      %1133 = vmatmul.mubr.f32.gmra.mrb[0].mxu0 %v812
      %v1134 = vpop.f32.mrb[0].mxu0
      %v1135 = vadd.f32 %v980, %v1134
      %v1136 = vpop.f32.mrb[0].mxu0
      %1137 = vmatprep.mubr.f32.mxu0 0.0
      %1138 = vmatmul.mubr.f32.gmra.mrb[0].mxu0 %v813
      %v1139 = vpop.f32.mrb[0].mxu0
      %v1140 = vadd.f32 %v985, %v1139
      %v1141 = vpop.f32.mrb[0].mxu0
      %1142 = vmatprep.mubr.f32.mxu0 0.0
      %1143 = vmatmul.mubr.f32.gmra.mrb[0].mxu0 %v814
      %v1144 = vpop.f32.mrb[0].mxu0
      %v1145 = vadd.f32 %v990, %v1144
      %v1146 = vpop.f32.mrb[0].mxu0
      %1147 = vmatprep.mubr.f32.mxu0 0.0
      %1148 = vmatmul.mubr.f32.gmra.mrb[0].mxu0 %v815
      %v1149 = vpop.f32.mrb[0].mxu0
      %v1150 = vadd.f32 %v995, %v1149
      %v1151 = vpop.f32.mrb[0].mxu0
      %1152 = vmatprep.mubr.f32.mxu0 0.0
      %1153 = vmatmul.mubr.f32.gmra.mrb[0].mxu0 %v816
      %v1154 = vpop.f32.mrb[0].mxu0
      %v1155 = vadd.f32 %v1000, %v1154
      %v1156 = vpop.f32.mrb[0].mxu0
      %1157 = vmatprep.mubr.f32.mxu0 0.0
      %1158 = vmatmul.mubr.f32.gmra.mrb[0].mxu0 %v817
      %v1159 = vpop.f32.mrb[0].mxu0
      %v1160 = vadd.f32 %v1005, %v1159
      %v1161 = vpop.f32.mrb[0].mxu0
      %1162 = vmatprep.mubr.f32.mxu0 0.0
      %1163 = vmatmul.mubr.f32.gmra.mrb[0].mxu0 %v818
      %v1164 = vpop.f32.mrb[0].mxu0
      %v1165 = vadd.f32 %v1010, %v1164
      %v1166 = vpop.f32.mrb[0].mxu0
      %1167 = vmatprep.mubr.f32.mxu0 0.0
      %1168 = vmatmul.mubr.f32.gmra.mrb[0].mxu0 %v819
      %v1169 = vpop.f32.mrb[0].mxu0
      %v1170 = vadd.f32 %v1015, %v1169
      %v1171 = vpop.f32.mrb[0].mxu0
      %1172 = vmatprep.mubr.f32.mxu0 0.0
      %1173 = vmatmul.mubr.f32.gmra.mrb[0].mxu0 %v820
      %v1174 = vpop.f32.mrb[0].mxu0
      %v1175 = vadd.f32 %v1020, %v1174
      %v1176 = vpop.f32.mrb[0].mxu0
      %1177 = vmatprep.mubr.f32.mxu0 0.0
      %1178 = vmatmul.mubr.f32.gmra.mrb[0].mxu0 %v821
      %v1179 = vpop.f32.mrb[0].mxu0
      %v1180 = vadd.f32 %v1025, %v1179
      %v1181 = vpop.f32.mrb[0].mxu0
      %1182 = vdwg.mxu0
      %v1183 = vld [vmem:[#allocation2 + $0x9] sm:$0xff]
      %v1184 = vld [vmem:[#allocation2 + $0x11] sm:$0xff]
      %v1185 = vld [vmem:[#allocation2 + $0x19] sm:$0xff]
      %v1186 = vld [vmem:[#allocation2 + $0x21] sm:$0xff]
      %v1187 = vld [vmem:[#allocation2 + $0x29] sm:$0xff]
      %v1188 = vld [vmem:[#allocation2 + $0x31] sm:$0xff]
      %v1189 = vld [vmem:[#allocation2 + $0x39] sm:$0xff]
      %v1190 = vld [vmem:[#allocation2 + $0x41] sm:$0xff]
      %v1191 = vld [vmem:[#allocation2 + $0x49] sm:$0xff]
      %v1192 = vld [vmem:[#allocation2 + $0x51] sm:$0xff]
      %v1193 = vld [vmem:[#allocation2 + $0x59] sm:$0xff]
      %v1194 = vld [vmem:[#allocation2 + $0x61] sm:$0xff]
      %v1195 = vld [vmem:[#allocation2 + $0x69] sm:$0xff]
      %v1196 = vld [vmem:[#allocation2 + $0x71] sm:$0xff]
      %v1197 = vld [vmem:[#allocation2 + $0x79] sm:$0xff]
      %v1198 = vld [vmem:[#allocation2 + $0x81] sm:$0xff]
      %v1199 = vld [vmem:[#allocation2 + $0x89] sm:$0xff]
      %v1200 = vld [vmem:[#allocation2 + $0x91] sm:$0xff]
      %s1201 = scalar_lea.vmem %s4, 256
      %v1202 = vld [vmem:[%s1201] sm:$0xff]
      %v1203 = vld [vmem:[%s1201 + $0x8] sm:$0xff]
      %v1204 = vld [vmem:[%s1201 + $0x10] sm:$0xff]
      %v1205 = vld [vmem:[%s1201 + $0x18] sm:$0xff]
      %v1206 = vld [vmem:[%s1201 + $0x20] sm:$0xff]
      %v1207 = vld [vmem:[%s1201 + $0x28] sm:$0xff]
      %v1208 = vld [vmem:[%s1201 + $0x30] sm:$0xff]
      %v1209 = vld [vmem:[%s1201 + $0x38] sm:$0xff]
      %v1210 = vld [vmem:[%s1201 + $0x40] sm:$0xff]
      %v1211 = vld [vmem:[%s1201 + $0x48] sm:$0xff]
      %v1212 = vld [vmem:[%s1201 + $0x50] sm:$0xff]
      %v1213 = vld [vmem:[%s1201 + $0x58] sm:$0xff]
      %v1214 = vld [vmem:[%s1201 + $0x60] sm:$0xff]
      %v1215 = vld [vmem:[%s1201 + $0x68] sm:$0xff]
      %v1216 = vld [vmem:[%s1201 + $0x70] sm:$0xff]
      %v1217 = vld [vmem:[%s1201 + $0x78] sm:$0xff]
      %1218 = vmatprep.subr.mxu0 0.0
      %1219 = vmatpush1.msra.mxu0 %v1202
      %1220 = vmatprep.subr.mxu0 0.0
      %1221 = vmatpush1.msra.mxu0 %v1203
      %1222 = vmatprep.subr.mxu0 0.0
      %1223 = vmatpush1.msra.mxu0 %v1204
      %1224 = vmatprep.subr.mxu0 0.0
      %1225 = vmatpush1.msra.mxu0 %v1205
      %1226 = vmatprep.subr.mxu0 0.0
      %1227 = vmatpush1.msra.mxu0 %v1206
      %1228 = vmatprep.subr.mxu0 0.0
      %1229 = vmatpush1.msra.mxu0 %v1207
      %1230 = vmatprep.subr.mxu0 0.0
      %1231 = vmatpush1.msra.mxu0 %v1208
      %1232 = vmatprep.subr.mxu0 0.0
      %1233 = vmatpush1.msra.mxu0 %v1209
      %1234 = vmatprep.subr.mxu0 0.0
      %1235 = vmatpush1.msra.mxu0 %v1210
      %1236 = vmatprep.subr.mxu0 0.0
      %1237 = vmatpush1.msra.mxu0 %v1211
      %1238 = vmatprep.subr.mxu0 0.0
      %1239 = vmatpush1.msra.mxu0 %v1212
      %1240 = vmatprep.subr.mxu0 0.0
      %1241 = vmatpush1.msra.mxu0 %v1213
      %1242 = vmatprep.subr.mxu0 0.0
      %1243 = vmatpush1.msra.mxu0 %v1214
      %1244 = vmatprep.subr.mxu0 0.0
      %1245 = vmatpush1.msra.mxu0 %v1215
      %1246 = vmatprep.subr.mxu0 0.0
      %1247 = vmatpush1.msra.mxu0 %v1216
      %1248 = vmatprep.subr.mxu0 0.0
      %1249 = vmatpush1.msra.mxu0 %v1217
      %1250 = vmatprep.subr.mxu0 0.0
      %1251 = vmatpush1.msra.mxu0 0.0
      %1252 = vmatprep.subr.mxu0 0.0
      %1253 = vmatpush1.msra.mxu0 0.0
      %1254 = vmatprep.subr.mxu0 0.0
      %1255 = vmatpush1.msra.mxu0 0.0
      %1256 = vmatprep.subr.mxu0 0.0
      %1257 = vmatpush1.msra.mxu0 0.0
      %1258 = vmatprep.subr.mxu0 0.0
      %1259 = vmatpush1.msra.mxu0 0.0
      %1260 = vmatprep.subr.mxu0 0.0
      %1261 = vmatpush1.msra.mxu0 0.0
      %1262 = vmatprep.subr.mxu0 0.0
      %1263 = vmatpush1.msra.mxu0 0.0
      %1264 = vmatprep.subr.mxu0 0.0
      %1265 = vmatpush1.msra.mxu0 0.0
      %1266 = vmatprep.subr.mxu0 0.0
      %1267 = vmatpush1.msra.mxu0 0.0
      %1268 = vmatprep.subr.mxu0 0.0
      %1269 = vmatpush1.msra.mxu0 0.0
      %1270 = vmatprep.subr.mxu0 0.0
      %1271 = vmatpush1.msra.mxu0 0.0
      %1272 = vmatprep.subr.mxu0 0.0
      %1273 = vmatpush1.msra.mxu0 0.0
      %1274 = vmatprep.subr.mxu0 0.0
      %1275 = vmatpush1.msra.mxu0 0.0
      %1276 = vmatprep.subr.mxu0 0.0
      %1277 = vmatpush1.msra.mxu0 0.0
      %1278 = vmatprep.subr.mxu0 0.0
      %1279 = vmatpush1.msra.mxu0 0.0
      %1280 = vmatprep.subr.mxu0 0.0
      %1281 = vmatpush1.msra.mxu0 0.0
      %1282 = vmatprep.mubr.f32.mxu0 0.0
      %1283 = vmatmul.mubr.f32.gmra.mrb[0].mxu0 %v1183
      %v1284 = vpop.f32.mrb[0].mxu0
      %v1285 = vadd.f32 0.0, %v1284
      %v1286 = vpop.f32.mrb[0].mxu0
      %1287 = vmatprep.mubr.f32.mxu0 0.0
      %1288 = vmatmul.mubr.f32.gmra.mrb[0].mxu0 %v1184
      %v1289 = vpop.f32.mrb[0].mxu0
      %v1290 = vadd.f32 0.0, %v1289
      %v1291 = vpop.f32.mrb[0].mxu0
      %1292 = vmatprep.mubr.f32.mxu0 0.0
      %1293 = vmatmul.mubr.f32.gmra.mrb[0].mxu0 %v1185
      %v1294 = vpop.f32.mrb[0].mxu0
      %v1295 = vadd.f32 0.0, %v1294
      %v1296 = vpop.f32.mrb[0].mxu0
      %1297 = vmatprep.mubr.f32.mxu0 0.0
      %1298 = vmatmul.mubr.f32.gmra.mrb[0].mxu0 %v1186
      %v1299 = vpop.f32.mrb[0].mxu0
      %v1300 = vadd.f32 0.0, %v1299
      %v1301 = vpop.f32.mrb[0].mxu0
      %1302 = vmatprep.mubr.f32.mxu0 0.0
      %1303 = vmatmul.mubr.f32.gmra.mrb[0].mxu0 %v1187
      %v1304 = vpop.f32.mrb[0].mxu0
      %v1305 = vadd.f32 0.0, %v1304
      %v1306 = vpop.f32.mrb[0].mxu0
      %1307 = vmatprep.mubr.f32.mxu0 0.0
      %1308 = vmatmul.mubr.f32.gmra.mrb[0].mxu0 %v1188
      %v1309 = vpop.f32.mrb[0].mxu0
      %v1310 = vadd.f32 0.0, %v1309
      %v1311 = vpop.f32.mrb[0].mxu0
      %1312 = vmatprep.mubr.f32.mxu0 0.0
      %1313 = vmatmul.mubr.f32.gmra.mrb[0].mxu0 %v1189
      %v1314 = vpop.f32.mrb[0].mxu0
      %v1315 = vadd.f32 0.0, %v1314
      %v1316 = vpop.f32.mrb[0].mxu0
      %1317 = vmatprep.mubr.f32.mxu0 0.0
      %1318 = vmatmul.mubr.f32.gmra.mrb[0].mxu0 %v1190
      %v1319 = vpop.f32.mrb[0].mxu0
      %v1320 = vadd.f32 0.0, %v1319
      %v1321 = vpop.f32.mrb[0].mxu0
      %1322 = vmatprep.mubr.f32.mxu0 0.0
      %1323 = vmatmul.mubr.f32.gmra.mrb[0].mxu0 %v1191
      %v1324 = vpop.f32.mrb[0].mxu0
      %v1325 = vadd.f32 0.0, %v1324
      %v1326 = vpop.f32.mrb[0].mxu0
      %1327 = vmatprep.mubr.f32.mxu0 0.0
      %1328 = vmatmul.mubr.f32.gmra.mrb[0].mxu0 %v1192
      %v1329 = vpop.f32.mrb[0].mxu0
      %v1330 = vadd.f32 0.0, %v1329
      %v1331 = vpop.f32.mrb[0].mxu0
      %1332 = vmatprep.mubr.f32.mxu0 0.0
      %1333 = vmatmul.mubr.f32.gmra.mrb[0].mxu0 %v1193
      %v1334 = vpop.f32.mrb[0].mxu0
      %v1335 = vadd.f32 0.0, %v1334
      %v1336 = vpop.f32.mrb[0].mxu0
      %1337 = vmatprep.mubr.f32.mxu0 0.0
      %1338 = vmatmul.mubr.f32.gmra.mrb[0].mxu0 %v1194
      %v1339 = vpop.f32.mrb[0].mxu0
      %v1340 = vadd.f32 0.0, %v1339
      %v1341 = vpop.f32.mrb[0].mxu0
      %1342 = vmatprep.mubr.f32.mxu0 0.0
      %1343 = vmatmul.mubr.f32.gmra.mrb[0].mxu0 %v1195
      %v1344 = vpop.f32.mrb[0].mxu0
      %v1345 = vadd.f32 0.0, %v1344
      %v1346 = vpop.f32.mrb[0].mxu0
      %1347 = vmatprep.mubr.f32.mxu0 0.0
      %1348 = vmatmul.mubr.f32.gmra.mrb[0].mxu0 %v1196
      %v1349 = vpop.f32.mrb[0].mxu0
      %v1350 = vadd.f32 0.0, %v1349
      %v1351 = vpop.f32.mrb[0].mxu0
      %1352 = vmatprep.mubr.f32.mxu0 0.0
      %1353 = vmatmul.mubr.f32.gmra.mrb[0].mxu0 %v1197
      %v1354 = vpop.f32.mrb[0].mxu0
      %v1355 = vadd.f32 0.0, %v1354
      %v1356 = vpop.f32.mrb[0].mxu0
      %1357 = vmatprep.mubr.f32.mxu0 0.0
      %1358 = vmatmul.mubr.f32.gmra.mrb[0].mxu0 %v1198
      %v1359 = vpop.f32.mrb[0].mxu0
      %v1360 = vadd.f32 0.0, %v1359
      %v1361 = vpop.f32.mrb[0].mxu0
      %1362 = vmatprep.mubr.f32.mxu0 0.0
      %1363 = vmatmul.mubr.f32.gmra.mrb[0].mxu0 %v1199
      %v1364 = vpop.f32.mrb[0].mxu0
      %v1365 = vadd.f32 0.0, %v1364
      %v1366 = vpop.f32.mrb[0].mxu0
      %1367 = vmatprep.mubr.f32.mxu0 0.0
      %1368 = vmatmul.mubr.f32.gmra.mrb[0].mxu0 %v1200
      %v1369 = vpop.f32.mrb[0].mxu0
      %v1370 = vadd.f32 0.0, %v1369
      %v1371 = vpop.f32.mrb[0].mxu0
      %1372 = vdwg.mxu0
      %v1373 = vadd.f32 %v1095, %v1285
      %v1374 = vadd.f32 %v1100, %v1290
      %v1375 = vadd.f32 %v1105, %v1295
      %v1376 = vadd.f32 %v1110, %v1300
      %v1377 = vadd.f32 %v1115, %v1305
      %v1378 = vadd.f32 %v1120, %v1310
      %v1379 = vadd.f32 %v1125, %v1315
      %v1380 = vadd.f32 %v1130, %v1320
      %v1381 = vadd.f32 %v1135, %v1325
      %v1382 = vadd.f32 %v1140, %v1330
      %v1383 = vadd.f32 %v1145, %v1335
      %v1384 = vadd.f32 %v1150, %v1340
      %v1385 = vadd.f32 %v1155, %v1345
      %v1386 = vadd.f32 %v1160, %v1350
      %v1387 = vadd.f32 %v1165, %v1355
      %v1388 = vadd.f32 %v1170, %v1360
      %v1389 = vadd.f32 %v1175, %v1365
      %v1390 = vadd.f32 %v1180, %v1370
      %v1391 = vld [vmem:[#allocation2 + $0x19] sm:$0xff]
      %v1392 = vld [vmem:[#allocation2 + $0x21] sm:$0xff]
      %v1393 = vld [vmem:[#allocation2 + $0x29] sm:$0xff]
      %v1394 = vld [vmem:[#allocation2 + $0x31] sm:$0xff]
      %v1395 = vld [vmem:[#allocation2 + $0x39] sm:$0xff]
      %v1396 = vld [vmem:[#allocation2 + $0x41] sm:$0xff]
      %v1397 = vld [vmem:[#allocation2 + $0x49] sm:$0xff]
      %v1398 = vld [vmem:[#allocation2 + $0x51] sm:$0xff]
      %v1399 = vld [vmem:[#allocation2 + $0x59] sm:$0xff]
      %v1400 = vld [vmem:[#allocation2 + $0x61] sm:$0xff]
      %v1401 = vld [vmem:[#allocation2 + $0x69] sm:$0xff]
      %v1402 = vld [vmem:[#allocation2 + $0x71] sm:$0xff]
      %v1403 = vld [vmem:[#allocation2 + $0x79] sm:$0xff]
      %v1404 = vld [vmem:[#allocation2 + $0x81] sm:$0xff]
      %v1405 = vld [vmem:[#allocation2 + $0x89] sm:$0xff]
      %v1406 = vld [vmem:[#allocation2 + $0x91] sm:$0xff]
      %v1407 = vld [vmem:[#allocation2 + $0x99] sm:$0xff]
      %v1408 = vld [vmem:[#allocation2 + $0xa1] sm:$0xff]
      %s1409 = scalar_lea.vmem %s4, 384
      %v1410 = vld [vmem:[%s1409] sm:$0xff]
      %v1411 = vld [vmem:[%s1409 + $0x8] sm:$0xff]
      %v1412 = vld [vmem:[%s1409 + $0x10] sm:$0xff]
      %v1413 = vld [vmem:[%s1409 + $0x18] sm:$0xff]
      %v1414 = vld [vmem:[%s1409 + $0x20] sm:$0xff]
      %v1415 = vld [vmem:[%s1409 + $0x28] sm:$0xff]
      %v1416 = vld [vmem:[%s1409 + $0x30] sm:$0xff]
      %v1417 = vld [vmem:[%s1409 + $0x38] sm:$0xff]
      %v1418 = vld [vmem:[%s1409 + $0x40] sm:$0xff]
      %v1419 = vld [vmem:[%s1409 + $0x48] sm:$0xff]
      %v1420 = vld [vmem:[%s1409 + $0x50] sm:$0xff]
      %v1421 = vld [vmem:[%s1409 + $0x58] sm:$0xff]
      %v1422 = vld [vmem:[%s1409 + $0x60] sm:$0xff]
      %v1423 = vld [vmem:[%s1409 + $0x68] sm:$0xff]
      %v1424 = vld [vmem:[%s1409 + $0x70] sm:$0xff]
      %v1425 = vld [vmem:[%s1409 + $0x78] sm:$0xff]
      %1426 = vmatprep.subr.mxu0 0.0
      %1427 = vmatpush1.msra.mxu0 %v1410
      %1428 = vmatprep.subr.mxu0 0.0
      %1429 = vmatpush1.msra.mxu0 %v1411
      %1430 = vmatprep.subr.mxu0 0.0
      %1431 = vmatpush1.msra.mxu0 %v1412
      %1432 = vmatprep.subr.mxu0 0.0
      %1433 = vmatpush1.msra.mxu0 %v1413
      %1434 = vmatprep.subr.mxu0 0.0
      %1435 = vmatpush1.msra.mxu0 %v1414
      %1436 = vmatprep.subr.mxu0 0.0
      %1437 = vmatpush1.msra.mxu0 %v1415
      %1438 = vmatprep.subr.mxu0 0.0
      %1439 = vmatpush1.msra.mxu0 %v1416
      %1440 = vmatprep.subr.mxu0 0.0
      %1441 = vmatpush1.msra.mxu0 %v1417
      %1442 = vmatprep.subr.mxu0 0.0
      %1443 = vmatpush1.msra.mxu0 %v1418
      %1444 = vmatprep.subr.mxu0 0.0
      %1445 = vmatpush1.msra.mxu0 %v1419
      %1446 = vmatprep.subr.mxu0 0.0
      %1447 = vmatpush1.msra.mxu0 %v1420
      %1448 = vmatprep.subr.mxu0 0.0
      %1449 = vmatpush1.msra.mxu0 %v1421
      %1450 = vmatprep.subr.mxu0 0.0
      %1451 = vmatpush1.msra.mxu0 %v1422
      %1452 = vmatprep.subr.mxu0 0.0
      %1453 = vmatpush1.msra.mxu0 %v1423
      %1454 = vmatprep.subr.mxu0 0.0
      %1455 = vmatpush1.msra.mxu0 %v1424
      %1456 = vmatprep.subr.mxu0 0.0
      %1457 = vmatpush1.msra.mxu0 %v1425
      %1458 = vmatprep.subr.mxu0 0.0
      %1459 = vmatpush1.msra.mxu0 0.0
      %1460 = vmatprep.subr.mxu0 0.0
      %1461 = vmatpush1.msra.mxu0 0.0
      %1462 = vmatprep.subr.mxu0 0.0
      %1463 = vmatpush1.msra.mxu0 0.0
      %1464 = vmatprep.subr.mxu0 0.0
      %1465 = vmatpush1.msra.mxu0 0.0
      %1466 = vmatprep.subr.mxu0 0.0
      %1467 = vmatpush1.msra.mxu0 0.0
      %1468 = vmatprep.subr.mxu0 0.0
      %1469 = vmatpush1.msra.mxu0 0.0
      %1470 = vmatprep.subr.mxu0 0.0
      %1471 = vmatpush1.msra.mxu0 0.0
      %1472 = vmatprep.subr.mxu0 0.0
      %1473 = vmatpush1.msra.mxu0 0.0
      %1474 = vmatprep.subr.mxu0 0.0
      %1475 = vmatpush1.msra.mxu0 0.0
      %1476 = vmatprep.subr.mxu0 0.0
      %1477 = vmatpush1.msra.mxu0 0.0
      %1478 = vmatprep.subr.mxu0 0.0
      %1479 = vmatpush1.msra.mxu0 0.0
      %1480 = vmatprep.subr.mxu0 0.0
      %1481 = vmatpush1.msra.mxu0 0.0
      %1482 = vmatprep.subr.mxu0 0.0
      %1483 = vmatpush1.msra.mxu0 0.0
      %1484 = vmatprep.subr.mxu0 0.0
      %1485 = vmatpush1.msra.mxu0 0.0
      %1486 = vmatprep.subr.mxu0 0.0
      %1487 = vmatpush1.msra.mxu0 0.0
      %1488 = vmatprep.subr.mxu0 0.0
      %1489 = vmatpush1.msra.mxu0 0.0
      %1490 = vmatprep.mubr.f32.mxu0 0.0
      %1491 = vmatmul.mubr.f32.gmra.mrb[0].mxu0 %v1391
      %v1492 = vpop.f32.mrb[0].mxu0
      %v1493 = vadd.f32 0.0, %v1492
      %v1494 = vpop.f32.mrb[0].mxu0
      %1495 = vmatprep.mubr.f32.mxu0 0.0
      %1496 = vmatmul.mubr.f32.gmra.mrb[0].mxu0 %v1392
      %v1497 = vpop.f32.mrb[0].mxu0
      %v1498 = vadd.f32 0.0, %v1497
      %v1499 = vpop.f32.mrb[0].mxu0
      %1500 = vmatprep.mubr.f32.mxu0 0.0
      %1501 = vmatmul.mubr.f32.gmra.mrb[0].mxu0 %v1393
      %v1502 = vpop.f32.mrb[0].mxu0
      %v1503 = vadd.f32 0.0, %v1502
      %v1504 = vpop.f32.mrb[0].mxu0
      %1505 = vmatprep.mubr.f32.mxu0 0.0
      %1506 = vmatmul.mubr.f32.gmra.mrb[0].mxu0 %v1394
      %v1507 = vpop.f32.mrb[0].mxu0
      %v1508 = vadd.f32 0.0, %v1507
      %v1509 = vpop.f32.mrb[0].mxu0
      %1510 = vmatprep.mubr.f32.mxu0 0.0
      %1511 = vmatmul.mubr.f32.gmra.mrb[0].mxu0 %v1395
      %v1512 = vpop.f32.mrb[0].mxu0
      %v1513 = vadd.f32 0.0, %v1512
      %v1514 = vpop.f32.mrb[0].mxu0
      %1515 = vmatprep.mubr.f32.mxu0 0.0
      %1516 = vmatmul.mubr.f32.gmra.mrb[0].mxu0 %v1396
      %v1517 = vpop.f32.mrb[0].mxu0
      %v1518 = vadd.f32 0.0, %v1517
      %v1519 = vpop.f32.mrb[0].mxu0
      %1520 = vmatprep.mubr.f32.mxu0 0.0
      %1521 = vmatmul.mubr.f32.gmra.mrb[0].mxu0 %v1397
      %v1522 = vpop.f32.mrb[0].mxu0
      %v1523 = vadd.f32 0.0, %v1522
      %v1524 = vpop.f32.mrb[0].mxu0
      %1525 = vmatprep.mubr.f32.mxu0 0.0
      %1526 = vmatmul.mubr.f32.gmra.mrb[0].mxu0 %v1398
      %v1527 = vpop.f32.mrb[0].mxu0
      %v1528 = vadd.f32 0.0, %v1527
      %v1529 = vpop.f32.mrb[0].mxu0
      %1530 = vmatprep.mubr.f32.mxu0 0.0
      %1531 = vmatmul.mubr.f32.gmra.mrb[0].mxu0 %v1399
      %v1532 = vpop.f32.mrb[0].mxu0
      %v1533 = vadd.f32 0.0, %v1532
      %v1534 = vpop.f32.mrb[0].mxu0
      %1535 = vmatprep.mubr.f32.mxu0 0.0
      %1536 = vmatmul.mubr.f32.gmra.mrb[0].mxu0 %v1400
      %v1537 = vpop.f32.mrb[0].mxu0
      %v1538 = vadd.f32 0.0, %v1537
      %v1539 = vpop.f32.mrb[0].mxu0
      %1540 = vmatprep.mubr.f32.mxu0 0.0
      %1541 = vmatmul.mubr.f32.gmra.mrb[0].mxu0 %v1401
      %v1542 = vpop.f32.mrb[0].mxu0
      %v1543 = vadd.f32 0.0, %v1542
      %v1544 = vpop.f32.mrb[0].mxu0
      %1545 = vmatprep.mubr.f32.mxu0 0.0
      %1546 = vmatmul.mubr.f32.gmra.mrb[0].mxu0 %v1402
      %v1547 = vpop.f32.mrb[0].mxu0
      %v1548 = vadd.f32 0.0, %v1547
      %v1549 = vpop.f32.mrb[0].mxu0
      %1550 = vmatprep.mubr.f32.mxu0 0.0
      %1551 = vmatmul.mubr.f32.gmra.mrb[0].mxu0 %v1403
      %v1552 = vpop.f32.mrb[0].mxu0
      %v1553 = vadd.f32 0.0, %v1552
      %v1554 = vpop.f32.mrb[0].mxu0
      %1555 = vmatprep.mubr.f32.mxu0 0.0
      %1556 = vmatmul.mubr.f32.gmra.mrb[0].mxu0 %v1404
      %v1557 = vpop.f32.mrb[0].mxu0
      %v1558 = vadd.f32 0.0, %v1557
      %v1559 = vpop.f32.mrb[0].mxu0
      %1560 = vmatprep.mubr.f32.mxu0 0.0
      %1561 = vmatmul.mubr.f32.gmra.mrb[0].mxu0 %v1405
      %v1562 = vpop.f32.mrb[0].mxu0
      %v1563 = vadd.f32 0.0, %v1562
      %v1564 = vpop.f32.mrb[0].mxu0
      %1565 = vmatprep.mubr.f32.mxu0 0.0
      %1566 = vmatmul.mubr.f32.gmra.mrb[0].mxu0 %v1406
      %v1567 = vpop.f32.mrb[0].mxu0
      %v1568 = vadd.f32 0.0, %v1567
      %v1569 = vpop.f32.mrb[0].mxu0
      %1570 = vmatprep.mubr.f32.mxu0 0.0
      %1571 = vmatmul.mubr.f32.gmra.mrb[0].mxu0 %v1407
      %v1572 = vpop.f32.mrb[0].mxu0
      %v1573 = vadd.f32 0.0, %v1572
      %v1574 = vpop.f32.mrb[0].mxu0
      %1575 = vmatprep.mubr.f32.mxu0 0.0
      %1576 = vmatmul.mubr.f32.gmra.mrb[0].mxu0 %v1408
      %v1577 = vpop.f32.mrb[0].mxu0
      %v1578 = vadd.f32 0.0, %v1577
      %v1579 = vpop.f32.mrb[0].mxu0
      %1580 = vdwg.mxu0
      %v1581 = vadd.f32 %v1373, %v1493
      %v1582 = vadd.f32 %v1374, %v1498
      %v1583 = vadd.f32 %v1375, %v1503
      %v1584 = vadd.f32 %v1376, %v1508
      %v1585 = vadd.f32 %v1377, %v1513
      %v1586 = vadd.f32 %v1378, %v1518
      %v1587 = vadd.f32 %v1379, %v1523
      %v1588 = vadd.f32 %v1380, %v1528
      %v1589 = vadd.f32 %v1381, %v1533
      %v1590 = vadd.f32 %v1382, %v1538
      %v1591 = vadd.f32 %v1383, %v1543
      %v1592 = vadd.f32 %v1384, %v1548
      %v1593 = vadd.f32 %v1385, %v1553
      %v1594 = vadd.f32 %v1386, %v1558
      %v1595 = vadd.f32 %v1387, %v1563
      %v1596 = vadd.f32 %v1388, %v1568
      %v1597 = vadd.f32 %v1389, %v1573
      %v1598 = vadd.f32 %v1390, %v1578
      %v1599 = vld [vmem:[#allocation2 + $0x1a] sm:$0xff]
      %v1600 = vld [vmem:[#allocation2 + $0x22] sm:$0xff]
      %v1601 = vld [vmem:[#allocation2 + $0x2a] sm:$0xff]
      %v1602 = vld [vmem:[#allocation2 + $0x32] sm:$0xff]
      %v1603 = vld [vmem:[#allocation2 + $0x3a] sm:$0xff]
      %v1604 = vld [vmem:[#allocation2 + $0x42] sm:$0xff]
      %v1605 = vld [vmem:[#allocation2 + $0x4a] sm:$0xff]
      %v1606 = vld [vmem:[#allocation2 + $0x52] sm:$0xff]
      %v1607 = vld [vmem:[#allocation2 + $0x5a] sm:$0xff]
      %v1608 = vld [vmem:[#allocation2 + $0x62] sm:$0xff]
      %v1609 = vld [vmem:[#allocation2 + $0x6a] sm:$0xff]
      %v1610 = vld [vmem:[#allocation2 + $0x72] sm:$0xff]
      %v1611 = vld [vmem:[#allocation2 + $0x7a] sm:$0xff]
      %v1612 = vld [vmem:[#allocation2 + $0x82] sm:$0xff]
      %v1613 = vld [vmem:[#allocation2 + $0x8a] sm:$0xff]
      %v1614 = vld [vmem:[#allocation2 + $0x92] sm:$0xff]
      %v1615 = vld [vmem:[#allocation2 + $0x9a] sm:$0xff]
      %v1616 = vld [vmem:[#allocation2 + $0xa2] sm:$0xff]
      %s1617 = scalar_lea.vmem %s4, 512
      %v1618 = vld [vmem:[%s1617] sm:$0xff]
      %v1619 = vld [vmem:[%s1617 + $0x8] sm:$0xff]
      %v1620 = vld [vmem:[%s1617 + $0x10] sm:$0xff]
      %v1621 = vld [vmem:[%s1617 + $0x18] sm:$0xff]
      %v1622 = vld [vmem:[%s1617 + $0x20] sm:$0xff]
      %v1623 = vld [vmem:[%s1617 + $0x28] sm:$0xff]
      %v1624 = vld [vmem:[%s1617 + $0x30] sm:$0xff]
      %v1625 = vld [vmem:[%s1617 + $0x38] sm:$0xff]
      %v1626 = vld [vmem:[%s1617 + $0x40] sm:$0xff]
      %v1627 = vld [vmem:[%s1617 + $0x48] sm:$0xff]
      %v1628 = vld [vmem:[%s1617 + $0x50] sm:$0xff]
      %v1629 = vld [vmem:[%s1617 + $0x58] sm:$0xff]
      %v1630 = vld [vmem:[%s1617 + $0x60] sm:$0xff]
      %v1631 = vld [vmem:[%s1617 + $0x68] sm:$0xff]
      %v1632 = vld [vmem:[%s1617 + $0x70] sm:$0xff]
      %v1633 = vld [vmem:[%s1617 + $0x78] sm:$0xff]
      %1634 = vmatprep.subr.mxu0 0.0
      %1635 = vmatpush1.msra.mxu0 %v1618
      %1636 = vmatprep.subr.mxu0 0.0
      %1637 = vmatpush1.msra.mxu0 %v1619
      %1638 = vmatprep.subr.mxu0 0.0
      %1639 = vmatpush1.msra.mxu0 %v1620
      %1640 = vmatprep.subr.mxu0 0.0
      %1641 = vmatpush1.msra.mxu0 %v1621
      %1642 = vmatprep.subr.mxu0 0.0
      %1643 = vmatpush1.msra.mxu0 %v1622
      %1644 = vmatprep.subr.mxu0 0.0
      %1645 = vmatpush1.msra.mxu0 %v1623
      %1646 = vmatprep.subr.mxu0 0.0
      %1647 = vmatpush1.msra.mxu0 %v1624
      %1648 = vmatprep.subr.mxu0 0.0
      %1649 = vmatpush1.msra.mxu0 %v1625
      %1650 = vmatprep.subr.mxu0 0.0
      %1651 = vmatpush1.msra.mxu0 %v1626
      %1652 = vmatprep.subr.mxu0 0.0
      %1653 = vmatpush1.msra.mxu0 %v1627
      %1654 = vmatprep.subr.mxu0 0.0
      %1655 = vmatpush1.msra.mxu0 %v1628
      %1656 = vmatprep.subr.mxu0 0.0
      %1657 = vmatpush1.msra.mxu0 %v1629
      %1658 = vmatprep.subr.mxu0 0.0
      %1659 = vmatpush1.msra.mxu0 %v1630
      %1660 = vmatprep.subr.mxu0 0.0
      %1661 = vmatpush1.msra.mxu0 %v1631
      %1662 = vmatprep.subr.mxu0 0.0
      %1663 = vmatpush1.msra.mxu0 %v1632
      %1664 = vmatprep.subr.mxu0 0.0
      %1665 = vmatpush1.msra.mxu0 %v1633
      %1666 = vmatprep.subr.mxu0 0.0
      %1667 = vmatpush1.msra.mxu0 0.0
      %1668 = vmatprep.subr.mxu0 0.0
      %1669 = vmatpush1.msra.mxu0 0.0
      %1670 = vmatprep.subr.mxu0 0.0
      %1671 = vmatpush1.msra.mxu0 0.0
      %1672 = vmatprep.subr.mxu0 0.0
      %1673 = vmatpush1.msra.mxu0 0.0
      %1674 = vmatprep.subr.mxu0 0.0
      %1675 = vmatpush1.msra.mxu0 0.0
      %1676 = vmatprep.subr.mxu0 0.0
      %1677 = vmatpush1.msra.mxu0 0.0
      %1678 = vmatprep.subr.mxu0 0.0
      %1679 = vmatpush1.msra.mxu0 0.0
      %1680 = vmatprep.subr.mxu0 0.0
      %1681 = vmatpush1.msra.mxu0 0.0
      %1682 = vmatprep.subr.mxu0 0.0
      %1683 = vmatpush1.msra.mxu0 0.0
      %1684 = vmatprep.subr.mxu0 0.0
      %1685 = vmatpush1.msra.mxu0 0.0
      %1686 = vmatprep.subr.mxu0 0.0
      %1687 = vmatpush1.msra.mxu0 0.0
      %1688 = vmatprep.subr.mxu0 0.0
      %1689 = vmatpush1.msra.mxu0 0.0
      %1690 = vmatprep.subr.mxu0 0.0
      %1691 = vmatpush1.msra.mxu0 0.0
      %1692 = vmatprep.subr.mxu0 0.0
      %1693 = vmatpush1.msra.mxu0 0.0
      %1694 = vmatprep.subr.mxu0 0.0
      %1695 = vmatpush1.msra.mxu0 0.0
      %1696 = vmatprep.subr.mxu0 0.0
      %1697 = vmatpush1.msra.mxu0 0.0
      %1698 = vmatprep.mubr.f32.mxu0 0.0
      %1699 = vmatmul.mubr.f32.gmra.mrb[0].mxu0 %v1599
      %v1700 = vpop.f32.mrb[0].mxu0
      %v1701 = vadd.f32 0.0, %v1700
      %v1702 = vpop.f32.mrb[0].mxu0
      %1703 = vmatprep.mubr.f32.mxu0 0.0
      %1704 = vmatmul.mubr.f32.gmra.mrb[0].mxu0 %v1600
      %v1705 = vpop.f32.mrb[0].mxu0
      %v1706 = vadd.f32 0.0, %v1705
      %v1707 = vpop.f32.mrb[0].mxu0
      %1708 = vmatprep.mubr.f32.mxu0 0.0
      %1709 = vmatmul.mubr.f32.gmra.mrb[0].mxu0 %v1601
      %v1710 = vpop.f32.mrb[0].mxu0
      %v1711 = vadd.f32 0.0, %v1710
      %v1712 = vpop.f32.mrb[0].mxu0
      %1713 = vmatprep.mubr.f32.mxu0 0.0
      %1714 = vmatmul.mubr.f32.gmra.mrb[0].mxu0 %v1602
      %v1715 = vpop.f32.mrb[0].mxu0
      %v1716 = vadd.f32 0.0, %v1715
      %v1717 = vpop.f32.mrb[0].mxu0
      %1718 = vmatprep.mubr.f32.mxu0 0.0
      %1719 = vmatmul.mubr.f32.gmra.mrb[0].mxu0 %v1603
      %v1720 = vpop.f32.mrb[0].mxu0
      %v1721 = vadd.f32 0.0, %v1720
      %v1722 = vpop.f32.mrb[0].mxu0
      %1723 = vmatprep.mubr.f32.mxu0 0.0
      %1724 = vmatmul.mubr.f32.gmra.mrb[0].mxu0 %v1604
      %v1725 = vpop.f32.mrb[0].mxu0
      %v1726 = vadd.f32 0.0, %v1725
      %v1727 = vpop.f32.mrb[0].mxu0
      %1728 = vmatprep.mubr.f32.mxu0 0.0
      %1729 = vmatmul.mubr.f32.gmra.mrb[0].mxu0 %v1605
      %v1730 = vpop.f32.mrb[0].mxu0
      %v1731 = vadd.f32 0.0, %v1730
      %v1732 = vpop.f32.mrb[0].mxu0
      %1733 = vmatprep.mubr.f32.mxu0 0.0
      %1734 = vmatmul.mubr.f32.gmra.mrb[0].mxu0 %v1606
      %v1735 = vpop.f32.mrb[0].mxu0
      %v1736 = vadd.f32 0.0, %v1735
      %v1737 = vpop.f32.mrb[0].mxu0
      %1738 = vmatprep.mubr.f32.mxu0 0.0
      %1739 = vmatmul.mubr.f32.gmra.mrb[0].mxu0 %v1607
      %v1740 = vpop.f32.mrb[0].mxu0
      %v1741 = vadd.f32 0.0, %v1740
      %v1742 = vpop.f32.mrb[0].mxu0
      %1743 = vmatprep.mubr.f32.mxu0 0.0
      %1744 = vmatmul.mubr.f32.gmra.mrb[0].mxu0 %v1608
      %v1745 = vpop.f32.mrb[0].mxu0
      %v1746 = vadd.f32 0.0, %v1745
      %v1747 = vpop.f32.mrb[0].mxu0
      %1748 = vmatprep.mubr.f32.mxu0 0.0
      %1749 = vmatmul.mubr.f32.gmra.mrb[0].mxu0 %v1609
      %v1750 = vpop.f32.mrb[0].mxu0
      %v1751 = vadd.f32 0.0, %v1750
      %v1752 = vpop.f32.mrb[0].mxu0
      %1753 = vmatprep.mubr.f32.mxu0 0.0
      %1754 = vmatmul.mubr.f32.gmra.mrb[0].mxu0 %v1610
      %v1755 = vpop.f32.mrb[0].mxu0
      %v1756 = vadd.f32 0.0, %v1755
      %v1757 = vpop.f32.mrb[0].mxu0
      %1758 = vmatprep.mubr.f32.mxu0 0.0
      %1759 = vmatmul.mubr.f32.gmra.mrb[0].mxu0 %v1611
      %v1760 = vpop.f32.mrb[0].mxu0
      %v1761 = vadd.f32 0.0, %v1760
      %v1762 = vpop.f32.mrb[0].mxu0
      %1763 = vmatprep.mubr.f32.mxu0 0.0
      %1764 = vmatmul.mubr.f32.gmra.mrb[0].mxu0 %v1612
      %v1765 = vpop.f32.mrb[0].mxu0
      %v1766 = vadd.f32 0.0, %v1765
      %v1767 = vpop.f32.mrb[0].mxu0
      %1768 = vmatprep.mubr.f32.mxu0 0.0
      %1769 = vmatmul.mubr.f32.gmra.mrb[0].mxu0 %v1613
      %v1770 = vpop.f32.mrb[0].mxu0
      %v1771 = vadd.f32 0.0, %v1770
      %v1772 = vpop.f32.mrb[0].mxu0
      %1773 = vmatprep.mubr.f32.mxu0 0.0
      %1774 = vmatmul.mubr.f32.gmra.mrb[0].mxu0 %v1614
      %v1775 = vpop.f32.mrb[0].mxu0
      %v1776 = vadd.f32 0.0, %v1775
      %v1777 = vpop.f32.mrb[0].mxu0
      %1778 = vmatprep.mubr.f32.mxu0 0.0
      %1779 = vmatmul.mubr.f32.gmra.mrb[0].mxu0 %v1615
      %v1780 = vpop.f32.mrb[0].mxu0
      %v1781 = vadd.f32 0.0, %v1780
      %v1782 = vpop.f32.mrb[0].mxu0
      %1783 = vmatprep.mubr.f32.mxu0 0.0
      %1784 = vmatmul.mubr.f32.gmra.mrb[0].mxu0 %v1616
      %v1785 = vpop.f32.mrb[0].mxu0
      %v1786 = vadd.f32 0.0, %v1785
      %v1787 = vpop.f32.mrb[0].mxu0
      %1788 = vdwg.mxu0
      %v1789 = vadd.f32 %v1581, %v1701
      %v1790 = vadd.f32 %v1582, %v1706
      %v1791 = vadd.f32 %v1583, %v1711
      %v1792 = vadd.f32 %v1584, %v1716
      %v1793 = vadd.f32 %v1585, %v1721
      %v1794 = vadd.f32 %v1586, %v1726
      %v1795 = vadd.f32 %v1587, %v1731
      %v1796 = vadd.f32 %v1588, %v1736
      %v1797 = vadd.f32 %v1589, %v1741
      %v1798 = vadd.f32 %v1590, %v1746
      %v1799 = vadd.f32 %v1591, %v1751
      %v1800 = vadd.f32 %v1592, %v1756
      %v1801 = vadd.f32 %v1593, %v1761
      %v1802 = vadd.f32 %v1594, %v1766
      %v1803 = vadd.f32 %v1595, %v1771
      %v1804 = vadd.f32 %v1596, %v1776
      %v1805 = vadd.f32 %v1597, %v1781
      %v1806 = vadd.f32 %v1598, %v1786
      %v1807 = vld [vmem:[#allocation2 + $0x1b] sm:$0xff]
      %v1808 = vld [vmem:[#allocation2 + $0x23] sm:$0xff]
      %v1809 = vld [vmem:[#allocation2 + $0x2b] sm:$0xff]
      %v1810 = vld [vmem:[#allocation2 + $0x33] sm:$0xff]
      %v1811 = vld [vmem:[#allocation2 + $0x3b] sm:$0xff]
      %v1812 = vld [vmem:[#allocation2 + $0x43] sm:$0xff]
      %v1813 = vld [vmem:[#allocation2 + $0x4b] sm:$0xff]
      %v1814 = vld [vmem:[#allocation2 + $0x53] sm:$0xff]
      %v1815 = vld [vmem:[#allocation2 + $0x5b] sm:$0xff]
      %v1816 = vld [vmem:[#allocation2 + $0x63] sm:$0xff]
      %v1817 = vld [vmem:[#allocation2 + $0x6b] sm:$0xff]
      %v1818 = vld [vmem:[#allocation2 + $0x73] sm:$0xff]
      %v1819 = vld [vmem:[#allocation2 + $0x7b] sm:$0xff]
      %v1820 = vld [vmem:[#allocation2 + $0x83] sm:$0xff]
      %v1821 = vld [vmem:[#allocation2 + $0x8b] sm:$0xff]
      %v1822 = vld [vmem:[#allocation2 + $0x93] sm:$0xff]
      %v1823 = vld [vmem:[#allocation2 + $0x9b] sm:$0xff]
      %v1824 = vld [vmem:[#allocation2 + $0xa3] sm:$0xff]
      %s1825 = scalar_lea.vmem %s4, 640
      %v1826 = vld [vmem:[%s1825] sm:$0xff]
      %v1827 = vld [vmem:[%s1825 + $0x8] sm:$0xff]
      %v1828 = vld [vmem:[%s1825 + $0x10] sm:$0xff]
      %v1829 = vld [vmem:[%s1825 + $0x18] sm:$0xff]
      %v1830 = vld [vmem:[%s1825 + $0x20] sm:$0xff]
      %v1831 = vld [vmem:[%s1825 + $0x28] sm:$0xff]
      %v1832 = vld [vmem:[%s1825 + $0x30] sm:$0xff]
      %v1833 = vld [vmem:[%s1825 + $0x38] sm:$0xff]
      %v1834 = vld [vmem:[%s1825 + $0x40] sm:$0xff]
      %v1835 = vld [vmem:[%s1825 + $0x48] sm:$0xff]
      %v1836 = vld [vmem:[%s1825 + $0x50] sm:$0xff]
      %v1837 = vld [vmem:[%s1825 + $0x58] sm:$0xff]
      %v1838 = vld [vmem:[%s1825 + $0x60] sm:$0xff]
      %v1839 = vld [vmem:[%s1825 + $0x68] sm:$0xff]
      %v1840 = vld [vmem:[%s1825 + $0x70] sm:$0xff]
      %v1841 = vld [vmem:[%s1825 + $0x78] sm:$0xff]
      %1842 = vmatprep.subr.mxu0 0.0
      %1843 = vmatpush1.msra.mxu0 %v1826
      %1844 = vmatprep.subr.mxu0 0.0
      %1845 = vmatpush1.msra.mxu0 %v1827
      %1846 = vmatprep.subr.mxu0 0.0
      %1847 = vmatpush1.msra.mxu0 %v1828
      %1848 = vmatprep.subr.mxu0 0.0
      %1849 = vmatpush1.msra.mxu0 %v1829
      %1850 = vmatprep.subr.mxu0 0.0
      %1851 = vmatpush1.msra.mxu0 %v1830
      %1852 = vmatprep.subr.mxu0 0.0
      %1853 = vmatpush1.msra.mxu0 %v1831
      %1854 = vmatprep.subr.mxu0 0.0
      %1855 = vmatpush1.msra.mxu0 %v1832
      %1856 = vmatprep.subr.mxu0 0.0
      %1857 = vmatpush1.msra.mxu0 %v1833
      %1858 = vmatprep.subr.mxu0 0.0
      %1859 = vmatpush1.msra.mxu0 %v1834
      %1860 = vmatprep.subr.mxu0 0.0
      %1861 = vmatpush1.msra.mxu0 %v1835
      %1862 = vmatprep.subr.mxu0 0.0
      %1863 = vmatpush1.msra.mxu0 %v1836
      %1864 = vmatprep.subr.mxu0 0.0
      %1865 = vmatpush1.msra.mxu0 %v1837
      %1866 = vmatprep.subr.mxu0 0.0
      %1867 = vmatpush1.msra.mxu0 %v1838
      %1868 = vmatprep.subr.mxu0 0.0
      %1869 = vmatpush1.msra.mxu0 %v1839
      %1870 = vmatprep.subr.mxu0 0.0
      %1871 = vmatpush1.msra.mxu0 %v1840
      %1872 = vmatprep.subr.mxu0 0.0
      %1873 = vmatpush1.msra.mxu0 %v1841
      %1874 = vmatprep.subr.mxu0 0.0
      %1875 = vmatpush1.msra.mxu0 0.0
      %1876 = vmatprep.subr.mxu0 0.0
      %1877 = vmatpush1.msra.mxu0 0.0
      %1878 = vmatprep.subr.mxu0 0.0
      %1879 = vmatpush1.msra.mxu0 0.0
      %1880 = vmatprep.subr.mxu0 0.0
      %1881 = vmatpush1.msra.mxu0 0.0
      %1882 = vmatprep.subr.mxu0 0.0
      %1883 = vmatpush1.msra.mxu0 0.0
      %1884 = vmatprep.subr.mxu0 0.0
      %1885 = vmatpush1.msra.mxu0 0.0
      %1886 = vmatprep.subr.mxu0 0.0
      %1887 = vmatpush1.msra.mxu0 0.0
      %1888 = vmatprep.subr.mxu0 0.0
      %1889 = vmatpush1.msra.mxu0 0.0
      %1890 = vmatprep.subr.mxu0 0.0
      %1891 = vmatpush1.msra.mxu0 0.0
      %1892 = vmatprep.subr.mxu0 0.0
      %1893 = vmatpush1.msra.mxu0 0.0
      %1894 = vmatprep.subr.mxu0 0.0
      %1895 = vmatpush1.msra.mxu0 0.0
      %1896 = vmatprep.subr.mxu0 0.0
      %1897 = vmatpush1.msra.mxu0 0.0
      %1898 = vmatprep.subr.mxu0 0.0
      %1899 = vmatpush1.msra.mxu0 0.0
      %1900 = vmatprep.subr.mxu0 0.0
      %1901 = vmatpush1.msra.mxu0 0.0
      %1902 = vmatprep.subr.mxu0 0.0
      %1903 = vmatpush1.msra.mxu0 0.0
      %1904 = vmatprep.subr.mxu0 0.0
      %1905 = vmatpush1.msra.mxu0 0.0
      %1906 = vmatprep.mubr.f32.mxu0 0.0
      %1907 = vmatmul.mubr.f32.gmra.mrb[0].mxu0 %v1807
      %v1908 = vpop.f32.mrb[0].mxu0
      %v1909 = vadd.f32 0.0, %v1908
      %v1910 = vpop.f32.mrb[0].mxu0
      %1911 = vmatprep.mubr.f32.mxu0 0.0
      %1912 = vmatmul.mubr.f32.gmra.mrb[0].mxu0 %v1808
      %v1913 = vpop.f32.mrb[0].mxu0
      %v1914 = vadd.f32 0.0, %v1913
      %v1915 = vpop.f32.mrb[0].mxu0
      %1916 = vmatprep.mubr.f32.mxu0 0.0
      %1917 = vmatmul.mubr.f32.gmra.mrb[0].mxu0 %v1809
      %v1918 = vpop.f32.mrb[0].mxu0
      %v1919 = vadd.f32 0.0, %v1918
      %v1920 = vpop.f32.mrb[0].mxu0
      %1921 = vmatprep.mubr.f32.mxu0 0.0
      %1922 = vmatmul.mubr.f32.gmra.mrb[0].mxu0 %v1810
      %v1923 = vpop.f32.mrb[0].mxu0
      %v1924 = vadd.f32 0.0, %v1923
      %v1925 = vpop.f32.mrb[0].mxu0
      %1926 = vmatprep.mubr.f32.mxu0 0.0
      %1927 = vmatmul.mubr.f32.gmra.mrb[0].mxu0 %v1811
      %v1928 = vpop.f32.mrb[0].mxu0
      %v1929 = vadd.f32 0.0, %v1928
      %v1930 = vpop.f32.mrb[0].mxu0
      %1931 = vmatprep.mubr.f32.mxu0 0.0
      %1932 = vmatmul.mubr.f32.gmra.mrb[0].mxu0 %v1812
      %v1933 = vpop.f32.mrb[0].mxu0
      %v1934 = vadd.f32 0.0, %v1933
      %v1935 = vpop.f32.mrb[0].mxu0
      %1936 = vmatprep.mubr.f32.mxu0 0.0
      %1937 = vmatmul.mubr.f32.gmra.mrb[0].mxu0 %v1813
      %v1938 = vpop.f32.mrb[0].mxu0
      %v1939 = vadd.f32 0.0, %v1938
      %v1940 = vpop.f32.mrb[0].mxu0
      %1941 = vmatprep.mubr.f32.mxu0 0.0
      %1942 = vmatmul.mubr.f32.gmra.mrb[0].mxu0 %v1814
      %v1943 = vpop.f32.mrb[0].mxu0
      %v1944 = vadd.f32 0.0, %v1943
      %v1945 = vpop.f32.mrb[0].mxu0
      %1946 = vmatprep.mubr.f32.mxu0 0.0
      %1947 = vmatmul.mubr.f32.gmra.mrb[0].mxu0 %v1815
      %v1948 = vpop.f32.mrb[0].mxu0
      %v1949 = vadd.f32 0.0, %v1948
      %v1950 = vpop.f32.mrb[0].mxu0
      %1951 = vmatprep.mubr.f32.mxu0 0.0
      %1952 = vmatmul.mubr.f32.gmra.mrb[0].mxu0 %v1816
      %v1953 = vpop.f32.mrb[0].mxu0
      %v1954 = vadd.f32 0.0, %v1953
      %v1955 = vpop.f32.mrb[0].mxu0
      %1956 = vmatprep.mubr.f32.mxu0 0.0
      %1957 = vmatmul.mubr.f32.gmra.mrb[0].mxu0 %v1817
      %v1958 = vpop.f32.mrb[0].mxu0
      %v1959 = vadd.f32 0.0, %v1958
      %v1960 = vpop.f32.mrb[0].mxu0
      %1961 = vmatprep.mubr.f32.mxu0 0.0
      %1962 = vmatmul.mubr.f32.gmra.mrb[0].mxu0 %v1818
      %v1963 = vpop.f32.mrb[0].mxu0
      %v1964 = vadd.f32 0.0, %v1963
      %v1965 = vpop.f32.mrb[0].mxu0
      %1966 = vmatprep.mubr.f32.mxu0 0.0
      %1967 = vmatmul.mubr.f32.gmra.mrb[0].mxu0 %v1819
      %v1968 = vpop.f32.mrb[0].mxu0
      %v1969 = vadd.f32 0.0, %v1968
      %v1970 = vpop.f32.mrb[0].mxu0
      %1971 = vmatprep.mubr.f32.mxu0 0.0
      %1972 = vmatmul.mubr.f32.gmra.mrb[0].mxu0 %v1820
      %v1973 = vpop.f32.mrb[0].mxu0
      %v1974 = vadd.f32 0.0, %v1973
      %v1975 = vpop.f32.mrb[0].mxu0
      %1976 = vmatprep.mubr.f32.mxu0 0.0
      %1977 = vmatmul.mubr.f32.gmra.mrb[0].mxu0 %v1821
      %v1978 = vpop.f32.mrb[0].mxu0
      %v1979 = vadd.f32 0.0, %v1978
      %v1980 = vpop.f32.mrb[0].mxu0
      %1981 = vmatprep.mubr.f32.mxu0 0.0
      %1982 = vmatmul.mubr.f32.gmra.mrb[0].mxu0 %v1822
      %v1983 = vpop.f32.mrb[0].mxu0
      %v1984 = vadd.f32 0.0, %v1983
      %v1985 = vpop.f32.mrb[0].mxu0
      %1986 = vmatprep.mubr.f32.mxu0 0.0
      %1987 = vmatmul.mubr.f32.gmra.mrb[0].mxu0 %v1823
      %v1988 = vpop.f32.mrb[0].mxu0
      %v1989 = vadd.f32 0.0, %v1988
      %v1990 = vpop.f32.mrb[0].mxu0
      %1991 = vmatprep.mubr.f32.mxu0 0.0
      %1992 = vmatmul.mubr.f32.gmra.mrb[0].mxu0 %v1824
      %v1993 = vpop.f32.mrb[0].mxu0
      %v1994 = vadd.f32 0.0, %v1993
      %v1995 = vpop.f32.mrb[0].mxu0
      %1996 = vdwg.mxu0
      %v1997 = vadd.f32 %v1789, %v1909
      %v1998 = vadd.f32 %v1790, %v1914
      %v1999 = vadd.f32 %v1791, %v1919
      %v2000 = vadd.f32 %v1792, %v1924
      %v2001 = vadd.f32 %v1793, %v1929
      %v2002 = vadd.f32 %v1794, %v1934
      %v2003 = vadd.f32 %v1795, %v1939
      %v2004 = vadd.f32 %v1796, %v1944
      %v2005 = vadd.f32 %v1797, %v1949
      %v2006 = vadd.f32 %v1798, %v1954
      %v2007 = vadd.f32 %v1799, %v1959
      %v2008 = vadd.f32 %v1800, %v1964
      %v2009 = vadd.f32 %v1801, %v1969
      %v2010 = vadd.f32 %v1802, %v1974
      %v2011 = vadd.f32 %v1803, %v1979
      %v2012 = vadd.f32 %v1804, %v1984
      %v2013 = vadd.f32 %v1805, %v1989
      %v2014 = vadd.f32 %v1806, %v1994
      %v2015 = vld [vmem:[#allocation2 + $0x2b] sm:$0xff]
      %v2016 = vld [vmem:[#allocation2 + $0x33] sm:$0xff]
      %v2017 = vld [vmem:[#allocation2 + $0x3b] sm:$0xff]
      %v2018 = vld [vmem:[#allocation2 + $0x43] sm:$0xff]
      %v2019 = vld [vmem:[#allocation2 + $0x4b] sm:$0xff]
      %v2020 = vld [vmem:[#allocation2 + $0x53] sm:$0xff]
      %v2021 = vld [vmem:[#allocation2 + $0x5b] sm:$0xff]
      %v2022 = vld [vmem:[#allocation2 + $0x63] sm:$0xff]
      %v2023 = vld [vmem:[#allocation2 + $0x6b] sm:$0xff]
      %v2024 = vld [vmem:[#allocation2 + $0x73] sm:$0xff]
      %v2025 = vld [vmem:[#allocation2 + $0x7b] sm:$0xff]
      %v2026 = vld [vmem:[#allocation2 + $0x83] sm:$0xff]
      %v2027 = vld [vmem:[#allocation2 + $0x8b] sm:$0xff]
      %v2028 = vld [vmem:[#allocation2 + $0x93] sm:$0xff]
      %v2029 = vld [vmem:[#allocation2 + $0x9b] sm:$0xff]
      %v2030 = vld [vmem:[#allocation2 + $0xa3] sm:$0xff]
      %v2031 = vld [vmem:[#allocation2 + $0xab] sm:$0xff]
      %v2032 = vld [vmem:[#allocation2 + $0xb3] sm:$0xff]
      %s2033 = scalar_lea.vmem %s4, 768
      %v2034 = vld [vmem:[%s2033] sm:$0xff]
      %v2035 = vld [vmem:[%s2033 + $0x8] sm:$0xff]
      %v2036 = vld [vmem:[%s2033 + $0x10] sm:$0xff]
      %v2037 = vld [vmem:[%s2033 + $0x18] sm:$0xff]
      %v2038 = vld [vmem:[%s2033 + $0x20] sm:$0xff]
      %v2039 = vld [vmem:[%s2033 + $0x28] sm:$0xff]
      %v2040 = vld [vmem:[%s2033 + $0x30] sm:$0xff]
      %v2041 = vld [vmem:[%s2033 + $0x38] sm:$0xff]
      %v2042 = vld [vmem:[%s2033 + $0x40] sm:$0xff]
      %v2043 = vld [vmem:[%s2033 + $0x48] sm:$0xff]
      %v2044 = vld [vmem:[%s2033 + $0x50] sm:$0xff]
      %v2045 = vld [vmem:[%s2033 + $0x58] sm:$0xff]
      %v2046 = vld [vmem:[%s2033 + $0x60] sm:$0xff]
      %v2047 = vld [vmem:[%s2033 + $0x68] sm:$0xff]
      %v2048 = vld [vmem:[%s2033 + $0x70] sm:$0xff]
      %v2049 = vld [vmem:[%s2033 + $0x78] sm:$0xff]
      %2050 = vmatprep.subr.mxu0 0.0
      %2051 = vmatpush1.msra.mxu0 %v2034
      %2052 = vmatprep.subr.mxu0 0.0
      %2053 = vmatpush1.msra.mxu0 %v2035
      %2054 = vmatprep.subr.mxu0 0.0
      %2055 = vmatpush1.msra.mxu0 %v2036
      %2056 = vmatprep.subr.mxu0 0.0
      %2057 = vmatpush1.msra.mxu0 %v2037
      %2058 = vmatprep.subr.mxu0 0.0
      %2059 = vmatpush1.msra.mxu0 %v2038
      %2060 = vmatprep.subr.mxu0 0.0
      %2061 = vmatpush1.msra.mxu0 %v2039
      %2062 = vmatprep.subr.mxu0 0.0
      %2063 = vmatpush1.msra.mxu0 %v2040
      %2064 = vmatprep.subr.mxu0 0.0
      %2065 = vmatpush1.msra.mxu0 %v2041
      %2066 = vmatprep.subr.mxu0 0.0
      %2067 = vmatpush1.msra.mxu0 %v2042
      %2068 = vmatprep.subr.mxu0 0.0
      %2069 = vmatpush1.msra.mxu0 %v2043
      %2070 = vmatprep.subr.mxu0 0.0
      %2071 = vmatpush1.msra.mxu0 %v2044
      %2072 = vmatprep.subr.mxu0 0.0
      %2073 = vmatpush1.msra.mxu0 %v2045
      %2074 = vmatprep.subr.mxu0 0.0
      %2075 = vmatpush1.msra.mxu0 %v2046
      %2076 = vmatprep.subr.mxu0 0.0
      %2077 = vmatpush1.msra.mxu0 %v2047
      %2078 = vmatprep.subr.mxu0 0.0
      %2079 = vmatpush1.msra.mxu0 %v2048
      %2080 = vmatprep.subr.mxu0 0.0
      %2081 = vmatpush1.msra.mxu0 %v2049
      %2082 = vmatprep.subr.mxu0 0.0
      %2083 = vmatpush1.msra.mxu0 0.0
      %2084 = vmatprep.subr.mxu0 0.0
      %2085 = vmatpush1.msra.mxu0 0.0
      %2086 = vmatprep.subr.mxu0 0.0
      %2087 = vmatpush1.msra.mxu0 0.0
      %2088 = vmatprep.subr.mxu0 0.0
      %2089 = vmatpush1.msra.mxu0 0.0
      %2090 = vmatprep.subr.mxu0 0.0
      %2091 = vmatpush1.msra.mxu0 0.0
      %2092 = vmatprep.subr.mxu0 0.0
      %2093 = vmatpush1.msra.mxu0 0.0
      %2094 = vmatprep.subr.mxu0 0.0
      %2095 = vmatpush1.msra.mxu0 0.0
      %2096 = vmatprep.subr.mxu0 0.0
      %2097 = vmatpush1.msra.mxu0 0.0
      %2098 = vmatprep.subr.mxu0 0.0
      %2099 = vmatpush1.msra.mxu0 0.0
      %2100 = vmatprep.subr.mxu0 0.0
      %2101 = vmatpush1.msra.mxu0 0.0
      %2102 = vmatprep.subr.mxu0 0.0
      %2103 = vmatpush1.msra.mxu0 0.0
      %2104 = vmatprep.subr.mxu0 0.0
      %2105 = vmatpush1.msra.mxu0 0.0
      %2106 = vmatprep.subr.mxu0 0.0
      %2107 = vmatpush1.msra.mxu0 0.0
      %2108 = vmatprep.subr.mxu0 0.0
      %2109 = vmatpush1.msra.mxu0 0.0
      %2110 = vmatprep.subr.mxu0 0.0
      %2111 = vmatpush1.msra.mxu0 0.0
      %2112 = vmatprep.subr.mxu0 0.0
      %2113 = vmatpush1.msra.mxu0 0.0
      %2114 = vmatprep.mubr.f32.mxu0 0.0
      %2115 = vmatmul.mubr.f32.gmra.mrb[0].mxu0 %v2015
      %v2116 = vpop.f32.mrb[0].mxu0
      %v2117 = vadd.f32 0.0, %v2116
      %v2118 = vpop.f32.mrb[0].mxu0
      %2119 = vmatprep.mubr.f32.mxu0 0.0
      %2120 = vmatmul.mubr.f32.gmra.mrb[0].mxu0 %v2016
      %v2121 = vpop.f32.mrb[0].mxu0
      %v2122 = vadd.f32 0.0, %v2121
      %v2123 = vpop.f32.mrb[0].mxu0
      %2124 = vmatprep.mubr.f32.mxu0 0.0
      %2125 = vmatmul.mubr.f32.gmra.mrb[0].mxu0 %v2017
      %v2126 = vpop.f32.mrb[0].mxu0
      %v2127 = vadd.f32 0.0, %v2126
      %v2128 = vpop.f32.mrb[0].mxu0
      %2129 = vmatprep.mubr.f32.mxu0 0.0
      %2130 = vmatmul.mubr.f32.gmra.mrb[0].mxu0 %v2018
      %v2131 = vpop.f32.mrb[0].mxu0
      %v2132 = vadd.f32 0.0, %v2131
      %v2133 = vpop.f32.mrb[0].mxu0
      %2134 = vmatprep.mubr.f32.mxu0 0.0
      %2135 = vmatmul.mubr.f32.gmra.mrb[0].mxu0 %v2019
      %v2136 = vpop.f32.mrb[0].mxu0
      %v2137 = vadd.f32 0.0, %v2136
      %v2138 = vpop.f32.mrb[0].mxu0
      %2139 = vmatprep.mubr.f32.mxu0 0.0
      %2140 = vmatmul.mubr.f32.gmra.mrb[0].mxu0 %v2020
      %v2141 = vpop.f32.mrb[0].mxu0
      %v2142 = vadd.f32 0.0, %v2141
      %v2143 = vpop.f32.mrb[0].mxu0
      %2144 = vmatprep.mubr.f32.mxu0 0.0
      %2145 = vmatmul.mubr.f32.gmra.mrb[0].mxu0 %v2021
      %v2146 = vpop.f32.mrb[0].mxu0
      %v2147 = vadd.f32 0.0, %v2146
      %v2148 = vpop.f32.mrb[0].mxu0
      %2149 = vmatprep.mubr.f32.mxu0 0.0
      %2150 = vmatmul.mubr.f32.gmra.mrb[0].mxu0 %v2022
      %v2151 = vpop.f32.mrb[0].mxu0
      %v2152 = vadd.f32 0.0, %v2151
      %v2153 = vpop.f32.mrb[0].mxu0
      %2154 = vmatprep.mubr.f32.mxu0 0.0
      %2155 = vmatmul.mubr.f32.gmra.mrb[0].mxu0 %v2023
      %v2156 = vpop.f32.mrb[0].mxu0
      %v2157 = vadd.f32 0.0, %v2156
      %v2158 = vpop.f32.mrb[0].mxu0
      %2159 = vmatprep.mubr.f32.mxu0 0.0
      %2160 = vmatmul.mubr.f32.gmra.mrb[0].mxu0 %v2024
      %v2161 = vpop.f32.mrb[0].mxu0
      %v2162 = vadd.f32 0.0, %v2161
      %v2163 = vpop.f32.mrb[0].mxu0
      %2164 = vmatprep.mubr.f32.mxu0 0.0
      %2165 = vmatmul.mubr.f32.gmra.mrb[0].mxu0 %v2025
      %v2166 = vpop.f32.mrb[0].mxu0
      %v2167 = vadd.f32 0.0, %v2166
      %v2168 = vpop.f32.mrb[0].mxu0
      %2169 = vmatprep.mubr.f32.mxu0 0.0
      %2170 = vmatmul.mubr.f32.gmra.mrb[0].mxu0 %v2026
      %v2171 = vpop.f32.mrb[0].mxu0
      %v2172 = vadd.f32 0.0, %v2171
      %v2173 = vpop.f32.mrb[0].mxu0
      %2174 = vmatprep.mubr.f32.mxu0 0.0
      %2175 = vmatmul.mubr.f32.gmra.mrb[0].mxu0 %v2027
      %v2176 = vpop.f32.mrb[0].mxu0
      %v2177 = vadd.f32 0.0, %v2176
      %v2178 = vpop.f32.mrb[0].mxu0
      %2179 = vmatprep.mubr.f32.mxu0 0.0
      %2180 = vmatmul.mubr.f32.gmra.mrb[0].mxu0 %v2028
      %v2181 = vpop.f32.mrb[0].mxu0
      %v2182 = vadd.f32 0.0, %v2181
      %v2183 = vpop.f32.mrb[0].mxu0
      %2184 = vmatprep.mubr.f32.mxu0 0.0
      %2185 = vmatmul.mubr.f32.gmra.mrb[0].mxu0 %v2029
      %v2186 = vpop.f32.mrb[0].mxu0
      %v2187 = vadd.f32 0.0, %v2186
      %v2188 = vpop.f32.mrb[0].mxu0
      %2189 = vmatprep.mubr.f32.mxu0 0.0
      %2190 = vmatmul.mubr.f32.gmra.mrb[0].mxu0 %v2030
      %v2191 = vpop.f32.mrb[0].mxu0
      %v2192 = vadd.f32 0.0, %v2191
      %v2193 = vpop.f32.mrb[0].mxu0
      %2194 = vmatprep.mubr.f32.mxu0 0.0
      %2195 = vmatmul.mubr.f32.gmra.mrb[0].mxu0 %v2031
      %v2196 = vpop.f32.mrb[0].mxu0
      %v2197 = vadd.f32 0.0, %v2196
      %v2198 = vpop.f32.mrb[0].mxu0
      %2199 = vmatprep.mubr.f32.mxu0 0.0
      %2200 = vmatmul.mubr.f32.gmra.mrb[0].mxu0 %v2032
      %v2201 = vpop.f32.mrb[0].mxu0
      %v2202 = vadd.f32 0.0, %v2201
      %v2203 = vpop.f32.mrb[0].mxu0
      %2204 = vdwg.mxu0
      %v2205 = vadd.f32 %v1997, %v2117
      %v2206 = vadd.f32 %v1998, %v2122
      %v2207 = vadd.f32 %v1999, %v2127
      %v2208 = vadd.f32 %v2000, %v2132
      %v2209 = vadd.f32 %v2001, %v2137
      %v2210 = vadd.f32 %v2002, %v2142
      %v2211 = vadd.f32 %v2003, %v2147
      %v2212 = vadd.f32 %v2004, %v2152
      %v2213 = vadd.f32 %v2005, %v2157
      %v2214 = vadd.f32 %v2006, %v2162
      %v2215 = vadd.f32 %v2007, %v2167
      %v2216 = vadd.f32 %v2008, %v2172
      %v2217 = vadd.f32 %v2009, %v2177
      %v2218 = vadd.f32 %v2010, %v2182
      %v2219 = vadd.f32 %v2011, %v2187
      %v2220 = vadd.f32 %v2012, %v2192
      %v2221 = vadd.f32 %v2013, %v2197
      %v2222 = vadd.f32 %v2014, %v2202
      %v2223 = vld [vmem:[#allocation2 + $0x2c] sm:$0xff]
      %v2224 = vld [vmem:[#allocation2 + $0x34] sm:$0xff]
      %v2225 = vld [vmem:[#allocation2 + $0x3c] sm:$0xff]
      %v2226 = vld [vmem:[#allocation2 + $0x44] sm:$0xff]
      %v2227 = vld [vmem:[#allocation2 + $0x4c] sm:$0xff]
      %v2228 = vld [vmem:[#allocation2 + $0x54] sm:$0xff]
      %v2229 = vld [vmem:[#allocation2 + $0x5c] sm:$0xff]
      %v2230 = vld [vmem:[#allocation2 + $0x64] sm:$0xff]
      %v2231 = vld [vmem:[#allocation2 + $0x6c] sm:$0xff]
      %v2232 = vld [vmem:[#allocation2 + $0x74] sm:$0xff]
      %v2233 = vld [vmem:[#allocation2 + $0x7c] sm:$0xff]
      %v2234 = vld [vmem:[#allocation2 + $0x84] sm:$0xff]
      %v2235 = vld [vmem:[#allocation2 + $0x8c] sm:$0xff]
      %v2236 = vld [vmem:[#allocation2 + $0x94] sm:$0xff]
      %v2237 = vld [vmem:[#allocation2 + $0x9c] sm:$0xff]
      %v2238 = vld [vmem:[#allocation2 + $0xa4] sm:$0xff]
      %v2239 = vld [vmem:[#allocation2 + $0xac] sm:$0xff]
      %v2240 = vld [vmem:[#allocation2 + $0xb4] sm:$0xff]
      %s2241 = scalar_lea.vmem %s4, 896
      %v2242 = vld [vmem:[%s2241] sm:$0xff]
      %v2243 = vld [vmem:[%s2241 + $0x8] sm:$0xff]
      %v2244 = vld [vmem:[%s2241 + $0x10] sm:$0xff]
      %v2245 = vld [vmem:[%s2241 + $0x18] sm:$0xff]
      %v2246 = vld [vmem:[%s2241 + $0x20] sm:$0xff]
      %v2247 = vld [vmem:[%s2241 + $0x28] sm:$0xff]
      %v2248 = vld [vmem:[%s2241 + $0x30] sm:$0xff]
      %v2249 = vld [vmem:[%s2241 + $0x38] sm:$0xff]
      %v2250 = vld [vmem:[%s2241 + $0x40] sm:$0xff]
      %v2251 = vld [vmem:[%s2241 + $0x48] sm:$0xff]
      %v2252 = vld [vmem:[%s2241 + $0x50] sm:$0xff]
      %v2253 = vld [vmem:[%s2241 + $0x58] sm:$0xff]
      %v2254 = vld [vmem:[%s2241 + $0x60] sm:$0xff]
      %v2255 = vld [vmem:[%s2241 + $0x68] sm:$0xff]
      %v2256 = vld [vmem:[%s2241 + $0x70] sm:$0xff]
      %v2257 = vld [vmem:[%s2241 + $0x78] sm:$0xff]
      %2258 = vmatprep.subr.mxu0 0.0
      %2259 = vmatpush1.msra.mxu0 %v2242
      %2260 = vmatprep.subr.mxu0 0.0
      %2261 = vmatpush1.msra.mxu0 %v2243
      %2262 = vmatprep.subr.mxu0 0.0
      %2263 = vmatpush1.msra.mxu0 %v2244
      %2264 = vmatprep.subr.mxu0 0.0
      %2265 = vmatpush1.msra.mxu0 %v2245
      %2266 = vmatprep.subr.mxu0 0.0
      %2267 = vmatpush1.msra.mxu0 %v2246
      %2268 = vmatprep.subr.mxu0 0.0
      %2269 = vmatpush1.msra.mxu0 %v2247
      %2270 = vmatprep.subr.mxu0 0.0
      %2271 = vmatpush1.msra.mxu0 %v2248
      %2272 = vmatprep.subr.mxu0 0.0
      %2273 = vmatpush1.msra.mxu0 %v2249
      %2274 = vmatprep.subr.mxu0 0.0
      %2275 = vmatpush1.msra.mxu0 %v2250
      %2276 = vmatprep.subr.mxu0 0.0
      %2277 = vmatpush1.msra.mxu0 %v2251
      %2278 = vmatprep.subr.mxu0 0.0
      %2279 = vmatpush1.msra.mxu0 %v2252
      %2280 = vmatprep.subr.mxu0 0.0
      %2281 = vmatpush1.msra.mxu0 %v2253
      %2282 = vmatprep.subr.mxu0 0.0
      %2283 = vmatpush1.msra.mxu0 %v2254
      %2284 = vmatprep.subr.mxu0 0.0
      %2285 = vmatpush1.msra.mxu0 %v2255
      %2286 = vmatprep.subr.mxu0 0.0
      %2287 = vmatpush1.msra.mxu0 %v2256
      %2288 = vmatprep.subr.mxu0 0.0
      %2289 = vmatpush1.msra.mxu0 %v2257
      %2290 = vmatprep.subr.mxu0 0.0
      %2291 = vmatpush1.msra.mxu0 0.0
      %2292 = vmatprep.subr.mxu0 0.0
      %2293 = vmatpush1.msra.mxu0 0.0
      %2294 = vmatprep.subr.mxu0 0.0
      %2295 = vmatpush1.msra.mxu0 0.0
      %2296 = vmatprep.subr.mxu0 0.0
      %2297 = vmatpush1.msra.mxu0 0.0
      %2298 = vmatprep.subr.mxu0 0.0
      %2299 = vmatpush1.msra.mxu0 0.0
      %2300 = vmatprep.subr.mxu0 0.0
      %2301 = vmatpush1.msra.mxu0 0.0
      %2302 = vmatprep.subr.mxu0 0.0
      %2303 = vmatpush1.msra.mxu0 0.0
      %2304 = vmatprep.subr.mxu0 0.0
      %2305 = vmatpush1.msra.mxu0 0.0
      %2306 = vmatprep.subr.mxu0 0.0
      %2307 = vmatpush1.msra.mxu0 0.0
      %2308 = vmatprep.subr.mxu0 0.0
      %2309 = vmatpush1.msra.mxu0 0.0
      %2310 = vmatprep.subr.mxu0 0.0
      %2311 = vmatpush1.msra.mxu0 0.0
      %2312 = vmatprep.subr.mxu0 0.0
      %2313 = vmatpush1.msra.mxu0 0.0
      %2314 = vmatprep.subr.mxu0 0.0
      %2315 = vmatpush1.msra.mxu0 0.0
      %2316 = vmatprep.subr.mxu0 0.0
      %2317 = vmatpush1.msra.mxu0 0.0
      %2318 = vmatprep.subr.mxu0 0.0
      %2319 = vmatpush1.msra.mxu0 0.0
      %2320 = vmatprep.subr.mxu0 0.0
      %2321 = vmatpush1.msra.mxu0 0.0
      %2322 = vmatprep.mubr.f32.mxu0 0.0
      %2323 = vmatmul.mubr.f32.gmra.mrb[0].mxu0 %v2223
      %v2324 = vpop.f32.mrb[0].mxu0
      %v2325 = vadd.f32 0.0, %v2324
      %v2326 = vpop.f32.mrb[0].mxu0
      %2327 = vmatprep.mubr.f32.mxu0 0.0
      %2328 = vmatmul.mubr.f32.gmra.mrb[0].mxu0 %v2224
      %v2329 = vpop.f32.mrb[0].mxu0
      %v2330 = vadd.f32 0.0, %v2329
      %v2331 = vpop.f32.mrb[0].mxu0
      %2332 = vmatprep.mubr.f32.mxu0 0.0
      %2333 = vmatmul.mubr.f32.gmra.mrb[0].mxu0 %v2225
      %v2334 = vpop.f32.mrb[0].mxu0
      %v2335 = vadd.f32 0.0, %v2334
      %v2336 = vpop.f32.mrb[0].mxu0
      %2337 = vmatprep.mubr.f32.mxu0 0.0
      %2338 = vmatmul.mubr.f32.gmra.mrb[0].mxu0 %v2226
      %v2339 = vpop.f32.mrb[0].mxu0
      %v2340 = vadd.f32 0.0, %v2339
      %v2341 = vpop.f32.mrb[0].mxu0
      %2342 = vmatprep.mubr.f32.mxu0 0.0
      %2343 = vmatmul.mubr.f32.gmra.mrb[0].mxu0 %v2227
      %v2344 = vpop.f32.mrb[0].mxu0
      %v2345 = vadd.f32 0.0, %v2344
      %v2346 = vpop.f32.mrb[0].mxu0
      %2347 = vmatprep.mubr.f32.mxu0 0.0
      %2348 = vmatmul.mubr.f32.gmra.mrb[0].mxu0 %v2228
      %v2349 = vpop.f32.mrb[0].mxu0
      %v2350 = vadd.f32 0.0, %v2349
      %v2351 = vpop.f32.mrb[0].mxu0
      %2352 = vmatprep.mubr.f32.mxu0 0.0
      %2353 = vmatmul.mubr.f32.gmra.mrb[0].mxu0 %v2229
      %v2354 = vpop.f32.mrb[0].mxu0
      %v2355 = vadd.f32 0.0, %v2354
      %v2356 = vpop.f32.mrb[0].mxu0
      %2357 = vmatprep.mubr.f32.mxu0 0.0
      %2358 = vmatmul.mubr.f32.gmra.mrb[0].mxu0 %v2230
      %v2359 = vpop.f32.mrb[0].mxu0
      %v2360 = vadd.f32 0.0, %v2359
      %v2361 = vpop.f32.mrb[0].mxu0
      %2362 = vmatprep.mubr.f32.mxu0 0.0
      %2363 = vmatmul.mubr.f32.gmra.mrb[0].mxu0 %v2231
      %v2364 = vpop.f32.mrb[0].mxu0
      %v2365 = vadd.f32 0.0, %v2364
      %v2366 = vpop.f32.mrb[0].mxu0
      %2367 = vmatprep.mubr.f32.mxu0 0.0
      %2368 = vmatmul.mubr.f32.gmra.mrb[0].mxu0 %v2232
      %v2369 = vpop.f32.mrb[0].mxu0
      %v2370 = vadd.f32 0.0, %v2369
      %v2371 = vpop.f32.mrb[0].mxu0
      %2372 = vmatprep.mubr.f32.mxu0 0.0
      %2373 = vmatmul.mubr.f32.gmra.mrb[0].mxu0 %v2233
      %v2374 = vpop.f32.mrb[0].mxu0
      %v2375 = vadd.f32 0.0, %v2374
      %v2376 = vpop.f32.mrb[0].mxu0
      %2377 = vmatprep.mubr.f32.mxu0 0.0
      %2378 = vmatmul.mubr.f32.gmra.mrb[0].mxu0 %v2234
      %v2379 = vpop.f32.mrb[0].mxu0
      %v2380 = vadd.f32 0.0, %v2379
      %v2381 = vpop.f32.mrb[0].mxu0
      %2382 = vmatprep.mubr.f32.mxu0 0.0
      %2383 = vmatmul.mubr.f32.gmra.mrb[0].mxu0 %v2235
      %v2384 = vpop.f32.mrb[0].mxu0
      %v2385 = vadd.f32 0.0, %v2384
      %v2386 = vpop.f32.mrb[0].mxu0
      %2387 = vmatprep.mubr.f32.mxu0 0.0
      %2388 = vmatmul.mubr.f32.gmra.mrb[0].mxu0 %v2236
      %v2389 = vpop.f32.mrb[0].mxu0
      %v2390 = vadd.f32 0.0, %v2389
      %v2391 = vpop.f32.mrb[0].mxu0
      %2392 = vmatprep.mubr.f32.mxu0 0.0
      %2393 = vmatmul.mubr.f32.gmra.mrb[0].mxu0 %v2237
      %v2394 = vpop.f32.mrb[0].mxu0
      %v2395 = vadd.f32 0.0, %v2394
      %v2396 = vpop.f32.mrb[0].mxu0
      %2397 = vmatprep.mubr.f32.mxu0 0.0
      %2398 = vmatmul.mubr.f32.gmra.mrb[0].mxu0 %v2238
      %v2399 = vpop.f32.mrb[0].mxu0
      %v2400 = vadd.f32 0.0, %v2399
      %v2401 = vpop.f32.mrb[0].mxu0
      %2402 = vmatprep.mubr.f32.mxu0 0.0
      %2403 = vmatmul.mubr.f32.gmra.mrb[0].mxu0 %v2239
      %v2404 = vpop.f32.mrb[0].mxu0
      %v2405 = vadd.f32 0.0, %v2404
      %v2406 = vpop.f32.mrb[0].mxu0
      %2407 = vmatprep.mubr.f32.mxu0 0.0
      %2408 = vmatmul.mubr.f32.gmra.mrb[0].mxu0 %v2240
      %v2409 = vpop.f32.mrb[0].mxu0
      %v2410 = vadd.f32 0.0, %v2409
      %v2411 = vpop.f32.mrb[0].mxu0
      %2412 = vdwg.mxu0
      %v2413 = vadd.f32 %v2205, %v2325
      %v2414 = vadd.f32 %v2206, %v2330
      %v2415 = vadd.f32 %v2207, %v2335
      %v2416 = vadd.f32 %v2208, %v2340
      %v2417 = vadd.f32 %v2209, %v2345
      %v2418 = vadd.f32 %v2210, %v2350
      %v2419 = vadd.f32 %v2211, %v2355
      %v2420 = vadd.f32 %v2212, %v2360
      %v2421 = vadd.f32 %v2213, %v2365
      %v2422 = vadd.f32 %v2214, %v2370
      %v2423 = vadd.f32 %v2215, %v2375
      %v2424 = vadd.f32 %v2216, %v2380
      %v2425 = vadd.f32 %v2217, %v2385
      %v2426 = vadd.f32 %v2218, %v2390
      %v2427 = vadd.f32 %v2219, %v2395
      %v2428 = vadd.f32 %v2220, %v2400
      %v2429 = vadd.f32 %v2221, %v2405
      %v2430 = vadd.f32 %v2222, %v2410
      %v2431 = vld [vmem:[#allocation2 + $0x2d] sm:$0xff]
      %v2432 = vld [vmem:[#allocation2 + $0x35] sm:$0xff]
      %v2433 = vld [vmem:[#allocation2 + $0x3d] sm:$0xff]
      %v2434 = vld [vmem:[#allocation2 + $0x45] sm:$0xff]
      %v2435 = vld [vmem:[#allocation2 + $0x4d] sm:$0xff]
      %v2436 = vld [vmem:[#allocation2 + $0x55] sm:$0xff]
      %v2437 = vld [vmem:[#allocation2 + $0x5d] sm:$0xff]
      %v2438 = vld [vmem:[#allocation2 + $0x65] sm:$0xff]
      %v2439 = vld [vmem:[#allocation2 + $0x6d] sm:$0xff]
      %v2440 = vld [vmem:[#allocation2 + $0x75] sm:$0xff]
      %v2441 = vld [vmem:[#allocation2 + $0x7d] sm:$0xff]
      %v2442 = vld [vmem:[#allocation2 + $0x85] sm:$0xff]
      %v2443 = vld [vmem:[#allocation2 + $0x8d] sm:$0xff]
      %v2444 = vld [vmem:[#allocation2 + $0x95] sm:$0xff]
      %v2445 = vld [vmem:[#allocation2 + $0x9d] sm:$0xff]
      %v2446 = vld [vmem:[#allocation2 + $0xa5] sm:$0xff]
      %v2447 = vld [vmem:[#allocation2 + $0xad] sm:$0xff]
      %v2448 = vld [vmem:[#allocation2 + $0xb5] sm:$0xff]
      %s2449 = scalar_lea.vmem %s4, 1024
      %v2450 = vld [vmem:[%s2449] sm:$0xff]
      %v2451 = vld [vmem:[%s2449 + $0x8] sm:$0xff]
      %v2452 = vld [vmem:[%s2449 + $0x10] sm:$0xff]
      %v2453 = vld [vmem:[%s2449 + $0x18] sm:$0xff]
      %v2454 = vld [vmem:[%s2449 + $0x20] sm:$0xff]
      %v2455 = vld [vmem:[%s2449 + $0x28] sm:$0xff]
      %v2456 = vld [vmem:[%s2449 + $0x30] sm:$0xff]
      %v2457 = vld [vmem:[%s2449 + $0x38] sm:$0xff]
      %v2458 = vld [vmem:[%s2449 + $0x40] sm:$0xff]
      %v2459 = vld [vmem:[%s2449 + $0x48] sm:$0xff]
      %v2460 = vld [vmem:[%s2449 + $0x50] sm:$0xff]
      %v2461 = vld [vmem:[%s2449 + $0x58] sm:$0xff]
      %v2462 = vld [vmem:[%s2449 + $0x60] sm:$0xff]
      %v2463 = vld [vmem:[%s2449 + $0x68] sm:$0xff]
      %v2464 = vld [vmem:[%s2449 + $0x70] sm:$0xff]
      %v2465 = vld [vmem:[%s2449 + $0x78] sm:$0xff]
      %2466 = vmatprep.subr.mxu0 0.0
      %2467 = vmatpush1.msra.mxu0 %v2450
      %2468 = vmatprep.subr.mxu0 0.0
      %2469 = vmatpush1.msra.mxu0 %v2451
      %2470 = vmatprep.subr.mxu0 0.0
      %2471 = vmatpush1.msra.mxu0 %v2452
      %2472 = vmatprep.subr.mxu0 0.0
      %2473 = vmatpush1.msra.mxu0 %v2453
      %2474 = vmatprep.subr.mxu0 0.0
      %2475 = vmatpush1.msra.mxu0 %v2454
      %2476 = vmatprep.subr.mxu0 0.0
      %2477 = vmatpush1.msra.mxu0 %v2455
      %2478 = vmatprep.subr.mxu0 0.0
      %2479 = vmatpush1.msra.mxu0 %v2456
      %2480 = vmatprep.subr.mxu0 0.0
      %2481 = vmatpush1.msra.mxu0 %v2457
      %2482 = vmatprep.subr.mxu0 0.0
      %2483 = vmatpush1.msra.mxu0 %v2458
      %2484 = vmatprep.subr.mxu0 0.0
      %2485 = vmatpush1.msra.mxu0 %v2459
      %2486 = vmatprep.subr.mxu0 0.0
      %2487 = vmatpush1.msra.mxu0 %v2460
      %2488 = vmatprep.subr.mxu0 0.0
      %2489 = vmatpush1.msra.mxu0 %v2461
      %2490 = vmatprep.subr.mxu0 0.0
      %2491 = vmatpush1.msra.mxu0 %v2462
      %2492 = vmatprep.subr.mxu0 0.0
      %2493 = vmatpush1.msra.mxu0 %v2463
      %2494 = vmatprep.subr.mxu0 0.0
      %2495 = vmatpush1.msra.mxu0 %v2464
      %2496 = vmatprep.subr.mxu0 0.0
      %2497 = vmatpush1.msra.mxu0 %v2465
      %2498 = vmatprep.subr.mxu0 0.0
      %2499 = vmatpush1.msra.mxu0 0.0
      %2500 = vmatprep.subr.mxu0 0.0
      %2501 = vmatpush1.msra.mxu0 0.0
      %2502 = vmatprep.subr.mxu0 0.0
      %2503 = vmatpush1.msra.mxu0 0.0
      %2504 = vmatprep.subr.mxu0 0.0
      %2505 = vmatpush1.msra.mxu0 0.0
      %2506 = vmatprep.subr.mxu0 0.0
      %2507 = vmatpush1.msra.mxu0 0.0
      %2508 = vmatprep.subr.mxu0 0.0
      %2509 = vmatpush1.msra.mxu0 0.0
      %2510 = vmatprep.subr.mxu0 0.0
      %2511 = vmatpush1.msra.mxu0 0.0
      %2512 = vmatprep.subr.mxu0 0.0
      %2513 = vmatpush1.msra.mxu0 0.0
      %2514 = vmatprep.subr.mxu0 0.0
      %2515 = vmatpush1.msra.mxu0 0.0
      %2516 = vmatprep.subr.mxu0 0.0
      %2517 = vmatpush1.msra.mxu0 0.0
      %2518 = vmatprep.subr.mxu0 0.0
      %2519 = vmatpush1.msra.mxu0 0.0
      %2520 = vmatprep.subr.mxu0 0.0
      %2521 = vmatpush1.msra.mxu0 0.0
      %2522 = vmatprep.subr.mxu0 0.0
      %2523 = vmatpush1.msra.mxu0 0.0
      %2524 = vmatprep.subr.mxu0 0.0
      %2525 = vmatpush1.msra.mxu0 0.0
      %2526 = vmatprep.subr.mxu0 0.0
      %2527 = vmatpush1.msra.mxu0 0.0
      %2528 = vmatprep.subr.mxu0 0.0
      %2529 = vmatpush1.msra.mxu0 0.0
      %2530 = vmatprep.mubr.f32.mxu0 0.0
      %2531 = vmatmul.mubr.f32.gmra.mrb[0].mxu0 %v2431
      %v2532 = vpop.f32.mrb[0].mxu0
      %v2533 = vadd.f32 0.0, %v2532
      %v2534 = vpop.f32.mrb[0].mxu0
      %2535 = vmatprep.mubr.f32.mxu0 0.0
      %2536 = vmatmul.mubr.f32.gmra.mrb[0].mxu0 %v2432
      %v2537 = vpop.f32.mrb[0].mxu0
      %v2538 = vadd.f32 0.0, %v2537
      %v2539 = vpop.f32.mrb[0].mxu0
      %2540 = vmatprep.mubr.f32.mxu0 0.0
      %2541 = vmatmul.mubr.f32.gmra.mrb[0].mxu0 %v2433
      %v2542 = vpop.f32.mrb[0].mxu0
      %v2543 = vadd.f32 0.0, %v2542
      %v2544 = vpop.f32.mrb[0].mxu0
      %2545 = vmatprep.mubr.f32.mxu0 0.0
      %2546 = vmatmul.mubr.f32.gmra.mrb[0].mxu0 %v2434
      %v2547 = vpop.f32.mrb[0].mxu0
      %v2548 = vadd.f32 0.0, %v2547
      %v2549 = vpop.f32.mrb[0].mxu0
      %2550 = vmatprep.mubr.f32.mxu0 0.0
      %2551 = vmatmul.mubr.f32.gmra.mrb[0].mxu0 %v2435
      %v2552 = vpop.f32.mrb[0].mxu0
      %v2553 = vadd.f32 0.0, %v2552
      %v2554 = vpop.f32.mrb[0].mxu0
      %2555 = vmatprep.mubr.f32.mxu0 0.0
      %2556 = vmatmul.mubr.f32.gmra.mrb[0].mxu0 %v2436
      %v2557 = vpop.f32.mrb[0].mxu0
      %v2558 = vadd.f32 0.0, %v2557
      %v2559 = vpop.f32.mrb[0].mxu0
      %2560 = vmatprep.mubr.f32.mxu0 0.0
      %2561 = vmatmul.mubr.f32.gmra.mrb[0].mxu0 %v2437
      %v2562 = vpop.f32.mrb[0].mxu0
      %v2563 = vadd.f32 0.0, %v2562
      %v2564 = vpop.f32.mrb[0].mxu0
      %2565 = vmatprep.mubr.f32.mxu0 0.0
      %2566 = vmatmul.mubr.f32.gmra.mrb[0].mxu0 %v2438
      %v2567 = vpop.f32.mrb[0].mxu0
      %v2568 = vadd.f32 0.0, %v2567
      %v2569 = vpop.f32.mrb[0].mxu0
      %2570 = vmatprep.mubr.f32.mxu0 0.0
      %2571 = vmatmul.mubr.f32.gmra.mrb[0].mxu0 %v2439
      %v2572 = vpop.f32.mrb[0].mxu0
      %v2573 = vadd.f32 0.0, %v2572
      %v2574 = vpop.f32.mrb[0].mxu0
      %2575 = vmatprep.mubr.f32.mxu0 0.0
      %2576 = vmatmul.mubr.f32.gmra.mrb[0].mxu0 %v2440
      %v2577 = vpop.f32.mrb[0].mxu0
      %v2578 = vadd.f32 0.0, %v2577
      %v2579 = vpop.f32.mrb[0].mxu0
      %2580 = vmatprep.mubr.f32.mxu0 0.0
      %2581 = vmatmul.mubr.f32.gmra.mrb[0].mxu0 %v2441
      %v2582 = vpop.f32.mrb[0].mxu0
      %v2583 = vadd.f32 0.0, %v2582
      %v2584 = vpop.f32.mrb[0].mxu0
      %2585 = vmatprep.mubr.f32.mxu0 0.0
      %2586 = vmatmul.mubr.f32.gmra.mrb[0].mxu0 %v2442
      %v2587 = vpop.f32.mrb[0].mxu0
      %v2588 = vadd.f32 0.0, %v2587
      %v2589 = vpop.f32.mrb[0].mxu0
      %2590 = vmatprep.mubr.f32.mxu0 0.0
      %2591 = vmatmul.mubr.f32.gmra.mrb[0].mxu0 %v2443
      %v2592 = vpop.f32.mrb[0].mxu0
      %v2593 = vadd.f32 0.0, %v2592
      %v2594 = vpop.f32.mrb[0].mxu0
      %2595 = vmatprep.mubr.f32.mxu0 0.0
      %2596 = vmatmul.mubr.f32.gmra.mrb[0].mxu0 %v2444
      %v2597 = vpop.f32.mrb[0].mxu0
      %v2598 = vadd.f32 0.0, %v2597
      %v2599 = vpop.f32.mrb[0].mxu0
      %2600 = vmatprep.mubr.f32.mxu0 0.0
      %2601 = vmatmul.mubr.f32.gmra.mrb[0].mxu0 %v2445
      %v2602 = vpop.f32.mrb[0].mxu0
      %v2603 = vadd.f32 0.0, %v2602
      %v2604 = vpop.f32.mrb[0].mxu0
      %2605 = vmatprep.mubr.f32.mxu0 0.0
      %2606 = vmatmul.mubr.f32.gmra.mrb[0].mxu0 %v2446
      %v2607 = vpop.f32.mrb[0].mxu0
      %v2608 = vadd.f32 0.0, %v2607
      %v2609 = vpop.f32.mrb[0].mxu0
      %2610 = vmatprep.mubr.f32.mxu0 0.0
      %2611 = vmatmul.mubr.f32.gmra.mrb[0].mxu0 %v2447
      %v2612 = vpop.f32.mrb[0].mxu0
      %v2613 = vadd.f32 0.0, %v2612
      %v2614 = vpop.f32.mrb[0].mxu0
      %2615 = vmatprep.mubr.f32.mxu0 0.0
      %2616 = vmatmul.mubr.f32.gmra.mrb[0].mxu0 %v2448
      %v2617 = vpop.f32.mrb[0].mxu0
      %v2618 = vadd.f32 0.0, %v2617
      %v2619 = vpop.f32.mrb[0].mxu0
      %2620 = vdwg.mxu0
      %v2621 = vadd.f32 %v2413, %v2533
      %v2622 = vadd.f32 %v2414, %v2538
      %v2623 = vadd.f32 %v2415, %v2543
      %v2624 = vadd.f32 %v2416, %v2548
      %v2625 = vadd.f32 %v2417, %v2553
      %v2626 = vadd.f32 %v2418, %v2558
      %v2627 = vadd.f32 %v2419, %v2563
      %v2628 = vadd.f32 %v2420, %v2568
      %v2629 = vadd.f32 %v2421, %v2573
      %v2630 = vadd.f32 %v2422, %v2578
      %v2631 = vadd.f32 %v2423, %v2583
      %v2632 = vadd.f32 %v2424, %v2588
      %v2633 = vadd.f32 %v2425, %v2593
      %v2634 = vadd.f32 %v2426, %v2598
      %v2635 = vadd.f32 %v2427, %v2603
      %v2636 = vadd.f32 %v2428, %v2608
      %v2637 = vadd.f32 %v2429, %v2613
      %v2638 = vadd.f32 %v2430, %v2618
      %v2639 = vld [vmem:[%s5] sm:$0x1]
      %v2641 = vlaneseq
      %v2642 = vshrl.u32 %v2641, 7
      %v2643 = vsub.s32 0, %v2642
      %v2644 = vrot.slane %v2639, %v2643
      %v2646 = vadd.f32 %v2621, %v2644
      %v2647 = vadd.f32 %v2622, %v2644
      %v2648 = vadd.f32 %v2623, %v2644
      %v2649 = vadd.f32 %v2624, %v2644
      %v2650 = vadd.f32 %v2625, %v2644
      %v2651 = vadd.f32 %v2626, %v2644
      %v2652 = vadd.f32 %v2627, %v2644
      %v2653 = vadd.f32 %v2628, %v2644
      %v2654 = vadd.f32 %v2629, %v2644
      %v2655 = vadd.f32 %v2630, %v2644
      %v2656 = vadd.f32 %v2631, %v2644
      %v2657 = vadd.f32 %v2632, %v2644
      %v2658 = vadd.f32 %v2633, %v2644
      %v2659 = vadd.f32 %v2634, %v2644
      %v2660 = vadd.f32 %v2635, %v2644
      %v2661 = vadd.f32 %v2636, %v2644
      %v2662 = vadd.f32 %v2637, %v2644
      %v2663 = vadd.f32 %v2638, %v2644
      %vm2664 = vcmask 523264
      %2665 = vst.msk [vmem:[%s305] sm:$0xff] %vm2664, %v2646
      %2666 = vst.msk [vmem:[%s305 + $0x8] sm:$0xff] %vm2664, %v2647
      %2667 = vst.msk [vmem:[%s305 + $0x10] sm:$0xff] %vm2664, %v2648
      %2668 = vst.msk [vmem:[%s305 + $0x18] sm:$0xff] %vm2664, %v2649
      %2669 = vst.msk [vmem:[%s305 + $0x20] sm:$0xff] %vm2664, %v2650
      %2670 = vst.msk [vmem:[%s305 + $0x28] sm:$0xff] %vm2664, %v2651
      %2671 = vst.msk [vmem:[%s305 + $0x30] sm:$0xff] %vm2664, %v2652
      %2672 = vst.msk [vmem:[%s305 + $0x38] sm:$0xff] %vm2664, %v2653
      %2673 = vst.msk [vmem:[%s305 + $0x40] sm:$0xff] %vm2664, %v2654
      %2674 = vst.msk [vmem:[%s305 + $0x48] sm:$0xff] %vm2664, %v2655
      %2675 = vst.msk [vmem:[%s305 + $0x50] sm:$0xff] %vm2664, %v2656
      %2676 = vst.msk [vmem:[%s305 + $0x58] sm:$0xff] %vm2664, %v2657
      %2677 = vst.msk [vmem:[%s305 + $0x60] sm:$0xff] %vm2664, %v2658
      %2678 = vst.msk [vmem:[%s305 + $0x68] sm:$0xff] %vm2664, %v2659
      %2679 = vst.msk [vmem:[%s305 + $0x70] sm:$0xff] %vm2664, %v2660
      %2680 = vst.msk [vmem:[%s305 + $0x78] sm:$0xff] %vm2664, %v2661
      %2681 = vst.msk [vmem:[%s305 + $0x80] sm:$0xff] %vm2664, %v2662
      %2682 = vst.msk [vmem:[%s305 + $0x88] sm:$0xff] %vm2664, %v2663
      %s2683 = smul.u32 %s21, 2
      %s2684 = sadd.s32 %s2683, %s22
      %p2685 = scmp.lt.s32.totalorder %s2684, 3
      %s2686 = scalar_select %p2685, %s2684, 3
      %s2687 = smul.addr %s2686, 18
      %s2688 = smul.addr %s2687, 8
      %s2689 = scalar_lea.vmem %s6, %s2688
      // Predicated region
      $region49: #{tpu_custom_call.1} parent=43 // pred_check
        %p2690 = pneg %p191
      $region50: #{tpu_custom_call.1} parent=43 // pred_check_branch
        %2692 = sbr.rel (%p2690) target = $region52
      $region51: #{tpu_custom_call.1} parent=43 // pred_region
        %s2693 = smul.u32 %s21, 2
        %s2694 = sadd.s32 %s2693, %s22
      $region52: #{tpu_custom_call.1} parent=43 // pred_fallthru
        _
    $region44: #{tpu_custom_call.1} parent=5 // pred_fallthru
      _
    %p2695 = scmp.le.s32.totalorder 2, %s12
    // Predicated region
    $region53: #{tpu_custom_call.1} parent=5 // pred_check
      %p2696 = pneg %p2695
    $region54: #{tpu_custom_call.1} parent=5 // pred_check_branch
      %2698 = sbr.rel (%p2696) target = $region56
    $region55: #{tpu_custom_call.1} parent=5 // pred_region
      %s2699 = ssub.s32 %s12, 2
      // Predicated region
      $region57: #{tpu_custom_call.1} parent=55 // pred_check
        %p2700 = pneg %p197
      $region58: #{tpu_custom_call.1} parent=55 // pred_check_branch
        %2702 = sbr.rel (%p2700) target = $region60
      $region59: #{tpu_custom_call.1} parent=55 // pred_region
        %s2703 = smul.u32 %s23, 2
        %s2704 = sadd.s32 %s2703, %s24
        %p2705 = scmp.lt.s32.totalorder %s2704, 3
        %s2706 = scalar_select %p2705, %s2704, 3
        %s2707 = smul.addr %s2706, 18
        %s2708 = smul.addr %s2707, 8
        %s2709 = scalar_lea.vmem %s6, %s2708
      $region60: #{tpu_custom_call.1} parent=55 // pred_fallthru
        _
    $region56: #{tpu_custom_call.1} parent=5 // pred_fallthru
      _
  $region6: #{tpu_custom_call.1} parent=0 // loop_footer
    %s16 = sadd.s32 1, %s12
  $region7: #{tpu_custom_call.1} parent=0 // loop_footer_branch
    %11 = sbr.rel target = $region3
  $region8: #{tpu_custom_call.1} parent=0 // loop_exit
    _

</llo_original>
